<compile_context>
chip_gen: v7x
topology: tpu7x:2x2x1
jax: 0.10.0
libtpu: 0.0.40
codegen_flags: <defaults>
</compile_context>

<pallas_src>
import functools

import jax
import jax.numpy as jnp
from jax.experimental import pallas as pl
from jax.experimental.pallas import tpu as pltpu

MXU_DTYPE = jnp.bfloat16      # MXU input dtype; accumulation/epilogue in f32
FEATURE_CHANNEL = 8


def _round_up(x, m):
    return -(-x // m) * m


# ---------------------------------------------------------------------------
# Pallas kernels
# ---------------------------------------------------------------------------
def _matmul_bias_kernel(a_ref, w_ref, b_ref, o_ref, *, relu):
    acc = jnp.dot(a_ref[...], w_ref[...], preferred_element_type=jnp.float32)
    acc = acc + b_ref[...]                      # (TM, N) + (1, N) broadcast
    if relu:
        acc = jnp.maximum(acc, 0.0)
    o_ref[...] = acc


def pallas_matmul_bias(a, w, b, *, relu=False):
    """a: (M, K) f32, w: (K, N) f32, b: (N,) f32 -> (M, N) f32."""
    M, K = a.shape
    K2, N = w.shape
    assert K == K2
    k_pad = _round_up(K, 16)
    n_pad = _round_up(N, 128)                   # lane-dense output
    if M <= 256:                                # one block, minimal padding
        tm = _round_up(M, 16)
        m_pad = tm
    else:                                       # exactly two blocks (v7x TCs)
        tm = _round_up(-(-M // 2), 16)
        m_pad = 2 * tm

    a_p = jnp.pad(a, ((0, m_pad - M), (0, k_pad - K))).astype(MXU_DTYPE)
    w_p = jnp.pad(w, ((0, k_pad - K), (0, n_pad - N))).astype(MXU_DTYPE)
    b_p = jnp.pad(b, (0, n_pad - N)).reshape(1, n_pad).astype(jnp.float32)

    out = pl.pallas_call(
        functools.partial(_matmul_bias_kernel, relu=relu),
        out_shape=jax.ShapeDtypeStruct((m_pad, n_pad), jnp.float32),
        grid=(m_pad // tm,),
        in_specs=[
            pl.BlockSpec((tm, k_pad), lambda i: (i, 0)),
            pl.BlockSpec((k_pad, n_pad), lambda i: (0, 0)),
            pl.BlockSpec((1, n_pad), lambda i: (0, 0)),
        ],
        out_specs=pl.BlockSpec((tm, n_pad), lambda i: (i, 0)),
        compiler_params=pltpu.CompilerParams(
            dimension_semantics=("parallel",)),
    )(a_p, w_p, b_p)
    return out[:M, :N]


def _bmm_kernel(a_ref, w_ref, o_ref):
    o_ref[...] = jnp.dot(a_ref[...], w_ref[...],
                         preferred_element_type=jnp.float32)


def pallas_batched_matmul(a, w):
    """a: (G, M, K), w: (G, K, N) -> (G, M, N) f32; grid=(G,), one dot/step."""
    G, M, K = a.shape
    G2, K2, N = w.shape
    assert G == G2 and K == K2
    m_pad = _round_up(M, 16)
    k_pad = _round_up(K, 16)
    n_pad = _round_up(N, 128)
    a_p = jnp.pad(a, ((0, 0), (0, m_pad - M), (0, k_pad - K))).astype(MXU_DTYPE)
    w_p = jnp.pad(w, ((0, 0), (0, k_pad - K), (0, n_pad - N))).astype(MXU_DTYPE)

    out = pl.pallas_call(
        _bmm_kernel,
        out_shape=jax.ShapeDtypeStruct((G, m_pad, n_pad), jnp.float32),
        grid=(G,),
        in_specs=[
            pl.BlockSpec((None, m_pad, k_pad), lambda g: (g, 0, 0)),
            pl.BlockSpec((None, k_pad, n_pad), lambda g: (g, 0, 0)),
        ],
        out_specs=pl.BlockSpec((None, m_pad, n_pad), lambda g: (g, 0, 0)),
        compiler_params=pltpu.CompilerParams(
            dimension_semantics=("parallel",)),
    )(a_p, w_p)
    return out[:, :M, :N]


# ---------------------------------------------------------------------------
# NHWC conv glue (im2col = slices + one concat; no transposes)
# ---------------------------------------------------------------------------
def _im2col_nhwc(x, kh, kw, stride):
    """x: (B,H,W,C) -> (B*OH*OW, kh*kw*C) with (kh, kw, C) column ordering."""
    B, H, W, C = x.shape
    OH = (H - kh) // stride + 1
    OW = (W - kw) // stride + 1
    cols = []
    for i in range(kh):
        for j in range(kw):
            cols.append(x[:, i:i + stride * OH:stride,
                          j:j + stride * OW:stride, :])
    patches = jnp.concatenate(cols, axis=-1)     # (B, OH, OW, kh*kw*C)
    return patches.reshape(B * OH * OW, kh * kw * C), OH, OW


def _weight_matrix(w):
    """Torch conv weight (OC, C, KH, KW) -> (KH*KW*C, OC) for NHWC im2col."""
    return w.transpose(2, 3, 1, 0).reshape(-1, w.shape[0])


# ---------------------------------------------------------------------------
# Model pieces
# ---------------------------------------------------------------------------
def backbone_layer(xt, xd, w, b, *, stride, relu):
    """Shared-weight conv applied to template + detection (rows fused)."""
    kh, kw = w.shape[2], w.shape[3]
    pt, oht, owt = _im2col_nhwc(xt, kh, kw, stride)
    pd, ohd, owd = _im2col_nhwc(xd, kh, kw, stride)
    out = pallas_matmul_bias(jnp.concatenate([pt, pd], axis=0),
                             _weight_matrix(w), b, relu=relu)
    oc = w.shape[0]
    mt = pt.shape[0]
    yt = out[:mt].reshape(xt.shape[0], oht, owt, oc)
    yd = out[mt:].reshape(xd.shape[0], ohd, owd, oc)
    return yt, yd


def features(p, xt, xd):
    xt, xd = backbone_layer(xt, xd, p["b1_w"], p["b1_b"], stride=2, relu=True)
    xt, xd = backbone_layer(xt, xd, p["b2_w"], p["b2_b"], stride=1, relu=True)
    xt, xd = backbone_layer(xt, xd, p["b3_w"], p["b3_b"], stride=1, relu=False)
    return xt, xd


def fused_head_conv(x, w1, b1, w2, b2):
    """Two 3x3 convs sharing the same input, fused along N (lane-dense)."""
    kh, kw = w1.shape[2], w1.shape[3]
    pch, oh, ow = _im2col_nhwc(x, kh, kw, 1)
    wm = jnp.concatenate([_weight_matrix(w1), _weight_matrix(w2)], axis=1)
    bb = jnp.concatenate([b1, b2], axis=0)
    out = pallas_matmul_bias(pch, wm, bb, relu=False)
    B = x.shape[0]
    oc1, oc2 = w1.shape[0], w2.shape[0]
    y1 = out[:, :oc1].reshape(B, oh, ow, oc1)
    y2 = out[:, oc1:oc1 + oc2].reshape(B, oh, ow, oc2)
    return y1, y2


def fused_xcorr(kernel_score, conv_score, ch_score,
                kernel_reg, conv_reg, ch_reg):
    """Both per-batch cross-correlations in one batched pallas_call (grid=2B)."""
    B, kh, kw, _ = kernel_score.shape
    fc = conv_score.shape[-1]

    def weights(z, channels):
        # (B, kh, kw, channels*FC) -> (B, kh*kw*FC, channels); matches the
        # torch view(channels, FC, kh, kw) + conv2d semantics in NHWC im2col.
        z = z.reshape(B, kh, kw, channels, fc).transpose(0, 1, 2, 4, 3)
        return z.reshape(B, kh * kw * fc, channels)

    def patches(x):
        pch, oh, ow = _im2col_nhwc(x, kh, kw, 1)
        return pch.reshape(B, oh * ow, kh * kw * fc), oh, ow

    ps, oh, ow = patches(conv_score)
    pr, _, _ = patches(conv_reg)
    ws = weights(kernel_score, ch_score)
    wr = weights(kernel_reg, ch_reg)
    n_max = max(ch_score, ch_reg)
    ws = jnp.pad(ws, ((0, 0), (0, 0), (0, n_max - ch_score)))
    wr = jnp.pad(wr, ((0, 0), (0, 0), (0, n_max - ch_reg)))

    out = pallas_batched_matmul(jnp.concatenate([ps, pr], axis=0),
                                jnp.concatenate([ws, wr], axis=0))
    score = out[:B, :, :ch_score].reshape(B, oh, ow, ch_score)
    reg = out[B:, :, :ch_reg].reshape(B, oh, ow, ch_reg)
    return score, reg


def conv1x1(x, w, b):
    B, H, W, C = x.shape
    out = pallas_matmul_bias(x.reshape(B * H * W, C), _weight_matrix(w), b)
    return out.reshape(B, H, W, w.shape[0])


# ---------------------------------------------------------------------------
# SiamRPN forward (feature_channel kept small for the demo)
# ---------------------------------------------------------------------------
def init_params(key):
    """Matches _initialize_weights: conv weights ~ N(0, 0.01), biases = 0."""
    def conv(k, oc, c, kh, kw):
        return (0.01 * jax.random.normal(k, (oc, c, kh, kw), jnp.float32),
                jnp.zeros((oc,), jnp.float32))

    keys = jax.random.split(key, 8)
    fc = FEATURE_CHANNEL
    p = {}
    # synthetic AlexNet-like backbone (see TODO above)
    p["b1_w"], p["b1_b"] = conv(keys[0], fc, 3, 3, 3)
    p["b2_w"], p["b2_b"] = conv(keys[1], fc, fc, 3, 3)
    p["b3_w"], p["b3_b"] = conv(keys[2], fc, fc, 3, 3)
    # RPN heads
    p["cls1_w"], p["cls1_b"] = conv(keys[3], fc * 2 * 5, fc, 3, 3)
    p["r1_w"], p["r1_b"] = conv(keys[4], fc * 4 * 5, fc, 3, 3)
    p["cls2_w"], p["cls2_b"] = conv(keys[5], fc, fc, 3, 3)
    p["r2_w"], p["r2_b"] = conv(keys[6], fc, fc, 3, 3)
    # regress_adjust: Conv2d(20, 20, 1)
    p["adj_w"], p["adj_b"] = conv(keys[7], 4 * 5, 4 * 5, 1, 1)
    return p


def siamrpn_forward(p, template, detection):
    # NCHW (PyTorch interface) -> NHWC once
    xt = template.transpose(0, 2, 3, 1)
    xd = detection.transpose(0, 2, 3, 1)

    template_feature, detection_feature = features(p, xt, xd)

    kernel_score, kernel_regression = fused_head_conv(
        template_feature, p["cls1_w"], p["cls1_b"], p["r1_w"], p["r1_b"])
    conv_score, conv_regression = fused_head_conv(
        detection_feature, p["cls2_w"], p["cls2_b"], p["r2_w"], p["r2_b"])

    pred_score, xcorr_reg = fused_xcorr(
        kernel_score, conv_score, 2 * 5,
        kernel_regression, conv_regression, 4 * 5)
    pred_regression = conv1x1(xcorr_reg, p["adj_w"], p["adj_b"])

    # back to NCHW to match the PyTorch module's output layout
    return (pred_score.transpose(0, 3, 1, 2),
            pred_regression.transpose(0, 3, 1, 2))


if __name__ == "__main__":
    key = jax.random.PRNGKey(0)
    kp, kt, kd = jax.random.split(key, 3)

    params = init_params(kp)
    # small shapes: template 16x16, detection 28x28, RGB, batch=2
    template = jax.random.normal(kt, (2, 3, 16, 16), jnp.float32)
    detection = jax.random.normal(kd, (2, 3, 28, 28), jnp.float32)

    fwd = jax.jit(siamrpn_forward)
    pred_score, pred_regression = fwd(params, template, detection)
    jax.block_until_ready((pred_score, pred_regression))

    assert pred_score.shape == (2, 10, 7, 7), pred_score.shape
    assert pred_regression.shape == (2, 20, 7, 7), pred_regression.shape
    print("KERNEL_OK")
</pallas_src>

<mosaic_0001>
module attributes {stable_mosaic.version = 11 : i64} {
  func.func @_matmul_bias_kernel(%arg0: i32, %arg1: memref<224x32xbf16, #tpu.memory_space<vmem>>, %arg2: memref<32x128xbf16, #tpu.memory_space<vmem>>, %arg3: memref<1x128xf32, #tpu.memory_space<vmem>>, %arg4: memref<224x128xf32, #tpu.memory_space<vmem>>) attributes {dimension_semantics = [#tpu.dimension_semantics<parallel>], iteration_bounds = array<i64: 2>, scalar_prefetch = 0 : i64, scratch_operands = 0 : i64, tpu.core_type = #tpu.core_type<tc>, window_params = [{transform_indices = @transform_0, window_bounds = array<i64: 224, 32>}, {pipeline_mode = #tpu.pipeline_mode<synchronous>, transform_indices = @transform_1, window_bounds = array<i64: 32, 128>}, {pipeline_mode = #tpu.pipeline_mode<synchronous>, transform_indices = @transform_2, window_bounds = array<i64: 1, 128>}, {transform_indices = @transform_3, window_bounds = array<i64: 224, 128>}]} {
    %c0 = arith.constant 0 : index
    %c0_0 = arith.constant 0 : index
    %0 = vector.load %arg1[%c0, %c0_0] : memref<224x32xbf16, #tpu.memory_space<vmem>>, vector<224x32xbf16>
    %c0_1 = arith.constant 0 : index
    %c0_2 = arith.constant 0 : index
    %1 = vector.load %arg2[%c0_1, %c0_2] : memref<32x128xbf16, #tpu.memory_space<vmem>>, vector<32x128xbf16>
    %cst = arith.constant dense<0.000000e+00> : vector<224x128xf32>
    %2 = tpu.matmul %0, %1, %cst {dimension_numbers = #tpu.dot_dimension_numbers<[1], [0], [0], [1], [0, 0, 1, 1], [], []>} : vector<224x32xbf16>, vector<32x128xbf16>, vector<224x128xf32> -> vector<224x128xf32>
    %c0_3 = arith.constant 0 : index
    %c0_4 = arith.constant 0 : index
    %3 = vector.load %arg3[%c0_3, %c0_4] : memref<1x128xf32, #tpu.memory_space<vmem>>, vector<1x128xf32>
    %4 = vector.broadcast %3 : vector<1x128xf32> to vector<224x128xf32>
    %5 = arith.addf %2, %4 : vector<224x128xf32>
    %cst_5 = arith.constant 0.000000e+00 : f32
    %6 = vector.broadcast %cst_5 : f32 to vector<224x128xf32>
    %7 = arith.maximumf %5, %6 : vector<224x128xf32>
    %c0_6 = arith.constant 0 : index
    %c0_7 = arith.constant 0 : index
    %8 = vector.load %arg4[%c0_6, %c0_7] : memref<224x128xf32, #tpu.memory_space<vmem>>, vector<224x128xf32>
    tpu.vector_store %arg4[%c0_6, %c0_7], %7 {strides = array<i32>} : memref<224x128xf32, #tpu.memory_space<vmem>>, vector<224x128xf32>,
    return
  }
  func.func @transform_0(%arg0: i32) -> (i32, i32) {
    %c0_i32 = arith.constant 0 : i32
    %c0_i32_0 = arith.constant 0 : i32
    return %arg0, %c0_i32 : i32, i32
  }
  func.func @transform_1(%arg0: i32) -> (i32, i32) {
    %c0_i32 = arith.constant 0 : i32
    %c0_i32_0 = arith.constant 0 : i32
    %c0_i32_1 = arith.constant 0 : i32
    return %c0_i32, %c0_i32_0 : i32, i32
  }
  func.func @transform_2(%arg0: i32) -> (i32, i32) {
    %c0_i32 = arith.constant 0 : i32
    %c0_i32_0 = arith.constant 0 : i32
    %c0_i32_1 = arith.constant 0 : i32
    return %c0_i32, %c0_i32_0 : i32, i32
  }
  func.func @transform_3(%arg0: i32) -> (i32, i32) {
    %c0_i32 = arith.constant 0 : i32
    %c0_i32_0 = arith.constant 0 : i32
    return %arg0, %c0_i32 : i32, i32
  }
}

module attributes {stable_mosaic.version = 11 : i64} {
  func.func @_matmul_bias_kernel(%arg0: i32, %arg1: memref<160x80xbf16, #tpu.memory_space<vmem>>, %arg2: memref<80x128xbf16, #tpu.memory_space<vmem>>, %arg3: memref<1x128xf32, #tpu.memory_space<vmem>>, %arg4: memref<160x128xf32, #tpu.memory_space<vmem>>) attributes {dimension_semantics = [#tpu.dimension_semantics<parallel>], iteration_bounds = array<i64: 2>, scalar_prefetch = 0 : i64, scratch_operands = 0 : i64, tpu.core_type = #tpu.core_type<tc>, window_params = [{transform_indices = @transform_0, window_bounds = array<i64: 160, 80>}, {pipeline_mode = #tpu.pipeline_mode<synchronous>, transform_indices = @transform_1, window_bounds = array<i64: 80, 128>}, {pipeline_mode = #tpu.pipeline_mode<synchronous>, transform_indices = @transform_2, window_bounds = array<i64: 1, 128>}, {transform_indices = @transform_3, window_bounds = array<i64: 160, 128>}]} {
    %c0 = arith.constant 0 : index
    %c0_0 = arith.constant 0 : index
    %0 = vector.load %arg1[%c0, %c0_0] : memref<160x80xbf16, #tpu.memory_space<vmem>>, vector<160x80xbf16>
    %c0_1 = arith.constant 0 : index
    %c0_2 = arith.constant 0 : index
    %1 = vector.load %arg2[%c0_1, %c0_2] : memref<80x128xbf16, #tpu.memory_space<vmem>>, vector<80x128xbf16>
    %cst = arith.constant dense<0.000000e+00> : vector<160x128xf32>
    %2 = tpu.matmul %0, %1, %cst {dimension_numbers = #tpu.dot_dimension_numbers<[1], [0], [0], [1], [0, 0, 1, 1], [], []>} : vector<160x80xbf16>, vector<80x128xbf16>, vector<160x128xf32> -> vector<160x128xf32>
    %c0_3 = arith.constant 0 : index
    %c0_4 = arith.constant 0 : index
    %3 = vector.load %arg3[%c0_3, %c0_4] : memref<1x128xf32, #tpu.memory_space<vmem>>, vector<1x128xf32>
    %4 = vector.broadcast %3 : vector<1x128xf32> to vector<160x128xf32>
    %5 = arith.addf %2, %4 : vector<160x128xf32>
    %cst_5 = arith.constant 0.000000e+00 : f32
    %6 = vector.broadcast %cst_5 : f32 to vector<160x128xf32>
    %7 = arith.maximumf %5, %6 : vector<160x128xf32>
    %c0_6 = arith.constant 0 : index
    %c0_7 = arith.constant 0 : index
    %8 = vector.load %arg4[%c0_6, %c0_7] : memref<160x128xf32, #tpu.memory_space<vmem>>, vector<160x128xf32>
    tpu.vector_store %arg4[%c0_6, %c0_7], %7 {strides = array<i32>} : memref<160x128xf32, #tpu.memory_space<vmem>>, vector<160x128xf32>,
    return
  }
  func.func @transform_0(%arg0: i32) -> (i32, i32) {
    %c0_i32 = arith.constant 0 : i32
    %c0_i32_0 = arith.constant 0 : i32
    return %arg0, %c0_i32 : i32, i32
  }
  func.func @transform_1(%arg0: i32) -> (i32, i32) {
    %c0_i32 = arith.constant 0 : i32
    %c0_i32_0 = arith.constant 0 : i32
    %c0_i32_1 = arith.constant 0 : i32
    return %c0_i32, %c0_i32_0 : i32, i32
  }
  func.func @transform_2(%arg0: i32) -> (i32, i32) {
    %c0_i32 = arith.constant 0 : i32
    %c0_i32_0 = arith.constant 0 : i32
    %c0_i32_1 = arith.constant 0 : i32
    return %c0_i32, %c0_i32_0 : i32, i32
  }
  func.func @transform_3(%arg0: i32) -> (i32, i32) {
    %c0_i32 = arith.constant 0 : i32
    %c0_i32_0 = arith.constant 0 : i32
    return %arg0, %c0_i32 : i32, i32
  }
}

module attributes {stable_mosaic.version = 11 : i64} {
  func.func @_matmul_bias_kernel(%arg0: i32, %arg1: memref<192x80xbf16, #tpu.memory_space<vmem>>, %arg2: memref<80x128xbf16, #tpu.memory_space<vmem>>, %arg3: memref<1x128xf32, #tpu.memory_space<vmem>>, %arg4: memref<192x128xf32, #tpu.memory_space<vmem>>) attributes {dimension_semantics = [#tpu.dimension_semantics<parallel>], iteration_bounds = array<i64: 1>, scalar_prefetch = 0 : i64, scratch_operands = 0 : i64, tpu.core_type = #tpu.core_type<tc>, window_params = [{transform_indices = @transform_0, window_bounds = array<i64: 192, 80>}, {pipeline_mode = #tpu.pipeline_mode<synchronous>, transform_indices = @transform_1, window_bounds = array<i64: 80, 128>}, {pipeline_mode = #tpu.pipeline_mode<synchronous>, transform_indices = @transform_2, window_bounds = array<i64: 1, 128>}, {transform_indices = @transform_3, window_bounds = array<i64: 192, 128>}]} {
    %c0 = arith.constant 0 : index
    %c0_0 = arith.constant 0 : index
    %0 = vector.load %arg1[%c0, %c0_0] : memref<192x80xbf16, #tpu.memory_space<vmem>>, vector<192x80xbf16>
    %c0_1 = arith.constant 0 : index
    %c0_2 = arith.constant 0 : index
    %1 = vector.load %arg2[%c0_1, %c0_2] : memref<80x128xbf16, #tpu.memory_space<vmem>>, vector<80x128xbf16>
    %cst = arith.constant dense<0.000000e+00> : vector<192x128xf32>
    %2 = tpu.matmul %0, %1, %cst {dimension_numbers = #tpu.dot_dimension_numbers<[1], [0], [0], [1], [0, 0, 1, 1], [], []>} : vector<192x80xbf16>, vector<80x128xbf16>, vector<192x128xf32> -> vector<192x128xf32>
    %c0_3 = arith.constant 0 : index
    %c0_4 = arith.constant 0 : index
    %3 = vector.load %arg3[%c0_3, %c0_4] : memref<1x128xf32, #tpu.memory_space<vmem>>, vector<1x128xf32>
    %4 = vector.broadcast %3 : vector<1x128xf32> to vector<192x128xf32>
    %5 = arith.addf %2, %4 : vector<192x128xf32>
    %c0_5 = arith.constant 0 : index
    %c0_6 = arith.constant 0 : index
    %6 = vector.load %arg4[%c0_5, %c0_6] : memref<192x128xf32, #tpu.memory_space<vmem>>, vector<192x128xf32>
    tpu.vector_store %arg4[%c0_5, %c0_6], %5 {strides = array<i32>} : memref<192x128xf32, #tpu.memory_space<vmem>>, vector<192x128xf32>,
    return
  }
  func.func @transform_0(%arg0: i32) -> (i32, i32) {
    %c0_i32 = arith.constant 0 : i32
    %c0_i32_0 = arith.constant 0 : i32
    return %arg0, %c0_i32 : i32, i32
  }
  func.func @transform_1(%arg0: i32) -> (i32, i32) {
    %c0_i32 = arith.constant 0 : i32
    %c0_i32_0 = arith.constant 0 : i32
    %c0_i32_1 = arith.constant 0 : i32
    return %c0_i32, %c0_i32_0 : i32, i32
  }
  func.func @transform_2(%arg0: i32) -> (i32, i32) {
    %c0_i32 = arith.constant 0 : i32
    %c0_i32_0 = arith.constant 0 : i32
    %c0_i32_1 = arith.constant 0 : i32
    return %c0_i32, %c0_i32_0 : i32, i32
  }
  func.func @transform_3(%arg0: i32) -> (i32, i32) {
    %c0_i32 = arith.constant 0 : i32
    %c0_i32_0 = arith.constant 0 : i32
    return %arg0, %c0_i32 : i32, i32
  }
}

module attributes {stable_mosaic.version = 11 : i64} {
  func.func @_matmul_bias_kernel(%arg0: i32, %arg1: memref<16x80xbf16, #tpu.memory_space<vmem>>, %arg2: memref<80x256xbf16, #tpu.memory_space<vmem>>, %arg3: memref<1x256xf32, #tpu.memory_space<vmem>>, %arg4: memref<16x256xf32, #tpu.memory_space<vmem>>) attributes {dimension_semantics = [#tpu.dimension_semantics<parallel>], iteration_bounds = array<i64: 1>, scalar_prefetch = 0 : i64, scratch_operands = 0 : i64, tpu.core_type = #tpu.core_type<tc>, window_params = [{transform_indices = @transform_0, window_bounds = array<i64: 16, 80>}, {pipeline_mode = #tpu.pipeline_mode<synchronous>, transform_indices = @transform_1, window_bounds = array<i64: 80, 256>}, {pipeline_mode = #tpu.pipeline_mode<synchronous>, transform_indices = @transform_2, window_bounds = array<i64: 1, 256>}, {transform_indices = @transform_3, window_bounds = array<i64: 16, 256>}]} {
    %c0 = arith.constant 0 : index
    %c0_0 = arith.constant 0 : index
    %0 = vector.load %arg1[%c0, %c0_0] : memref<16x80xbf16, #tpu.memory_space<vmem>>, vector<16x80xbf16>
    %c0_1 = arith.constant 0 : index
    %c0_2 = arith.constant 0 : index
    %1 = vector.load %arg2[%c0_1, %c0_2] : memref<80x256xbf16, #tpu.memory_space<vmem>>, vector<80x256xbf16>
    %cst = arith.constant dense<0.000000e+00> : vector<16x256xf32>
    %2 = tpu.matmul %0, %1, %cst {dimension_numbers = #tpu.dot_dimension_numbers<[1], [0], [0], [1], [0, 0, 1, 1], [], []>} : vector<16x80xbf16>, vector<80x256xbf16>, vector<16x256xf32> -> vector<16x256xf32>
    %c0_3 = arith.constant 0 : index
    %c0_4 = arith.constant 0 : index
    %3 = vector.load %arg3[%c0_3, %c0_4] : memref<1x256xf32, #tpu.memory_space<vmem>>, vector<1x256xf32>
    %4 = vector.broadcast %3 : vector<1x256xf32> to vector<16x256xf32>
    %5 = arith.addf %2, %4 : vector<16x256xf32>
    %c0_5 = arith.constant 0 : index
    %c0_6 = arith.constant 0 : index
    %6 = vector.load %arg4[%c0_5, %c0_6] : memref<16x256xf32, #tpu.memory_space<vmem>>, vector<16x256xf32>
    tpu.vector_store %arg4[%c0_5, %c0_6], %5 {strides = array<i32>} : memref<16x256xf32, #tpu.memory_space<vmem>>, vector<16x256xf32>,
    return
  }
  func.func @transform_0(%arg0: i32) -> (i32, i32) {
    %c0_i32 = arith.constant 0 : i32
    %c0_i32_0 = arith.constant 0 : i32
    return %arg0, %c0_i32 : i32, i32
  }
  func.func @transform_1(%arg0: i32) -> (i32, i32) {
    %c0_i32 = arith.constant 0 : i32
    %c0_i32_0 = arith.constant 0 : i32
    %c0_i32_1 = arith.constant 0 : i32
    return %c0_i32, %c0_i32_0 : i32, i32
  }
  func.func @transform_2(%arg0: i32) -> (i32, i32) {
    %c0_i32 = arith.constant 0 : i32
    %c0_i32_0 = arith.constant 0 : i32
    %c0_i32_1 = arith.constant 0 : i32
    return %c0_i32, %c0_i32_0 : i32, i32
  }
  func.func @transform_3(%arg0: i32) -> (i32, i32) {
    %c0_i32 = arith.constant 0 : i32
    %c0_i32_0 = arith.constant 0 : i32
    return %arg0, %c0_i32 : i32, i32
  }
}

module attributes {stable_mosaic.version = 11 : i64} {
  func.func @_matmul_bias_kernel(%arg0: i32, %arg1: memref<112x80xbf16, #tpu.memory_space<vmem>>, %arg2: memref<80x128xbf16, #tpu.memory_space<vmem>>, %arg3: memref<1x128xf32, #tpu.memory_space<vmem>>, %arg4: memref<112x128xf32, #tpu.memory_space<vmem>>) attributes {dimension_semantics = [#tpu.dimension_semantics<parallel>], iteration_bounds = array<i64: 1>, scalar_prefetch = 0 : i64, scratch_operands = 0 : i64, tpu.core_type = #tpu.core_type<tc>, window_params = [{transform_indices = @transform_0, window_bounds = array<i64: 112, 80>}, {pipeline_mode = #tpu.pipeline_mode<synchronous>, transform_indices = @transform_1, window_bounds = array<i64: 80, 128>}, {pipeline_mode = #tpu.pipeline_mode<synchronous>, transform_indices = @transform_2, window_bounds = array<i64: 1, 128>}, {transform_indices = @transform_3, window_bounds = array<i64: 112, 128>}]} {
    %c0 = arith.constant 0 : index
    %c0_0 = arith.constant 0 : index
    %0 = vector.load %arg1[%c0, %c0_0] : memref<112x80xbf16, #tpu.memory_space<vmem>>, vector<112x80xbf16>
    %c0_1 = arith.constant 0 : index
    %c0_2 = arith.constant 0 : index
    %1 = vector.load %arg2[%c0_1, %c0_2] : memref<80x128xbf16, #tpu.memory_space<vmem>>, vector<80x128xbf16>
    %cst = arith.constant dense<0.000000e+00> : vector<112x128xf32>
    %2 = tpu.matmul %0, %1, %cst {dimension_numbers = #tpu.dot_dimension_numbers<[1], [0], [0], [1], [0, 0, 1, 1], [], []>} : vector<112x80xbf16>, vector<80x128xbf16>, vector<112x128xf32> -> vector<112x128xf32>
    %c0_3 = arith.constant 0 : index
    %c0_4 = arith.constant 0 : index
    %3 = vector.load %arg3[%c0_3, %c0_4] : memref<1x128xf32, #tpu.memory_space<vmem>>, vector<1x128xf32>
    %4 = vector.broadcast %3 : vector<1x128xf32> to vector<112x128xf32>
    %5 = arith.addf %2, %4 : vector<112x128xf32>
    %c0_5 = arith.constant 0 : index
    %c0_6 = arith.constant 0 : index
    %6 = vector.load %arg4[%c0_5, %c0_6] : memref<112x128xf32, #tpu.memory_space<vmem>>, vector<112x128xf32>
    tpu.vector_store %arg4[%c0_5, %c0_6], %5 {strides = array<i32>} : memref<112x128xf32, #tpu.memory_space<vmem>>, vector<112x128xf32>,
    return
  }
  func.func @transform_0(%arg0: i32) -> (i32, i32) {
    %c0_i32 = arith.constant 0 : i32
    %c0_i32_0 = arith.constant 0 : i32
    return %arg0, %c0_i32 : i32, i32
  }
  func.func @transform_1(%arg0: i32) -> (i32, i32) {
    %c0_i32 = arith.constant 0 : i32
    %c0_i32_0 = arith.constant 0 : i32
    %c0_i32_1 = arith.constant 0 : i32
    return %c0_i32, %c0_i32_0 : i32, i32
  }
  func.func @transform_2(%arg0: i32) -> (i32, i32) {
    %c0_i32 = arith.constant 0 : i32
    %c0_i32_0 = arith.constant 0 : i32
    %c0_i32_1 = arith.constant 0 : i32
    return %c0_i32, %c0_i32_0 : i32, i32
  }
  func.func @transform_3(%arg0: i32) -> (i32, i32) {
    %c0_i32 = arith.constant 0 : i32
    %c0_i32_0 = arith.constant 0 : i32
    return %arg0, %c0_i32 : i32, i32
  }
}

module attributes {stable_mosaic.version = 11 : i64} {
  func.func @_bmm_kernel(%arg0: i32, %arg1: memref<1x64x16xbf16, #tpu.memory_space<vmem>>, %arg2: memref<1x16x128xbf16, #tpu.memory_space<vmem>>, %arg3: memref<1x64x128xf32, #tpu.memory_space<vmem>>) attributes {dimension_semantics = [#tpu.dimension_semantics<parallel>], iteration_bounds = array<i64: 4>, scalar_prefetch = 0 : i64, scratch_operands = 0 : i64, tpu.core_type = #tpu.core_type<tc>, window_params = [{transform_indices = @transform_0, window_bounds = array<i64: 1, 64, 16>}, {transform_indices = @transform_1, window_bounds = array<i64: 1, 16, 128>}, {transform_indices = @transform_2, window_bounds = array<i64: 1, 64, 128>}]} {
    %c0 = arith.constant 0 : index
    %c0_0 = arith.constant 0 : index
    %c0_1 = arith.constant 0 : index
    %0 = vector.load %arg1[%c0, %c0_0, %c0_1] : memref<1x64x16xbf16, #tpu.memory_space<vmem>>, vector<1x64x16xbf16>
    %1 = vector.shape_cast %0 : vector<1x64x16xbf16> to vector<64x16xbf16>
    %c0_2 = arith.constant 0 : index
    %c0_3 = arith.constant 0 : index
    %c0_4 = arith.constant 0 : index
    %2 = vector.load %arg2[%c0_2, %c0_3, %c0_4] : memref<1x16x128xbf16, #tpu.memory_space<vmem>>, vector<1x16x128xbf16>
    %3 = vector.shape_cast %2 : vector<1x16x128xbf16> to vector<16x128xbf16>
    %cst = arith.constant dense<0.000000e+00> : vector<64x128xf32>
    %4 = tpu.matmul %1, %3, %cst {dimension_numbers = #tpu.dot_dimension_numbers<[1], [0], [0], [1], [0, 0, 1, 1], [], []>} : vector<64x16xbf16>, vector<16x128xbf16>, vector<64x128xf32> -> vector<64x128xf32>
    %c0_5 = arith.constant 0 : index
    %c0_6 = arith.constant 0 : index
    %c0_7 = arith.constant 0 : index
    %5 = vector.load %arg3[%c0_5, %c0_6, %c0_7] : memref<1x64x128xf32, #tpu.memory_space<vmem>>, vector<1x64x128xf32>
    %6 = vector.shape_cast %5 : vector<1x64x128xf32> to vector<64x128xf32>
    %7 = vector.shape_cast %4 : vector<64x128xf32> to vector<1x64x128xf32>
    tpu.vector_store %arg3[%c0_5, %c0_6, %c0_7], %7 {strides = array<i32>} : memref<1x64x128xf32, #tpu.memory_space<vmem>>, vector<1x64x128xf32>,
    return
  }
  func.func @transform_0(%arg0: i32) -> (i32, i32, i32) {
    %c0_i32 = arith.constant 0 : i32
    %c0_i32_0 = arith.constant 0 : i32
    %c0_i32_1 = arith.constant 0 : i32
    return %arg0, %c0_i32, %c0_i32_0 : i32, i32, i32
  }
  func.func @transform_1(%arg0: i32) -> (i32, i32, i32) {
    %c0_i32 = arith.constant 0 : i32
    %c0_i32_0 = arith.constant 0 : i32
    %c0_i32_1 = arith.constant 0 : i32
    return %arg0, %c0_i32, %c0_i32_0 : i32, i32, i32
  }
  func.func @transform_2(%arg0: i32) -> (i32, i32, i32) {
    %c0_i32 = arith.constant 0 : i32
    %c0_i32_0 = arith.constant 0 : i32
    %c0_i32_1 = arith.constant 0 : i32
    return %arg0, %c0_i32, %c0_i32_0 : i32, i32, i32
  }
}

module attributes {stable_mosaic.version = 11 : i64} {
  func.func @_matmul_bias_kernel(%arg0: i32, %arg1: memref<112x32xbf16, #tpu.memory_space<vmem>>, %arg2: memref<32x128xbf16, #tpu.memory_space<vmem>>, %arg3: memref<1x128xf32, #tpu.memory_space<vmem>>, %arg4: memref<112x128xf32, #tpu.memory_space<vmem>>) attributes {dimension_semantics = [#tpu.dimension_semantics<parallel>], iteration_bounds = array<i64: 1>, scalar_prefetch = 0 : i64, scratch_operands = 0 : i64, tpu.core_type = #tpu.core_type<tc>, window_params = [{transform_indices = @transform_0, window_bounds = array<i64: 112, 32>}, {pipeline_mode = #tpu.pipeline_mode<synchronous>, transform_indices = @transform_1, window_bounds = array<i64: 32, 128>}, {pipeline_mode = #tpu.pipeline_mode<synchronous>, transform_indices = @transform_2, window_bounds = array<i64: 1, 128>}, {transform_indices = @transform_3, window_bounds = array<i64: 112, 128>}]} {
    %c0 = arith.constant 0 : index
    %c0_0 = arith.constant 0 : index
    %0 = vector.load %arg1[%c0, %c0_0] : memref<112x32xbf16, #tpu.memory_space<vmem>>, vector<112x32xbf16>
    %c0_1 = arith.constant 0 : index
    %c0_2 = arith.constant 0 : index
    %1 = vector.load %arg2[%c0_1, %c0_2] : memref<32x128xbf16, #tpu.memory_space<vmem>>, vector<32x128xbf16>
    %cst = arith.constant dense<0.000000e+00> : vector<112x128xf32>
    %2 = tpu.matmul %0, %1, %cst {dimension_numbers = #tpu.dot_dimension_numbers<[1], [0], [0], [1], [0, 0, 1, 1], [], []>} : vector<112x32xbf16>, vector<32x128xbf16>, vector<112x128xf32> -> vector<112x128xf32>
    %c0_3 = arith.constant 0 : index
    %c0_4 = arith.constant 0 : index
    %3 = vector.load %arg3[%c0_3, %c0_4] : memref<1x128xf32, #tpu.memory_space<vmem>>, vector<1x128xf32>
    %4 = vector.broadcast %3 : vector<1x128xf32> to vector<112x128xf32>
    %5 = arith.addf %2, %4 : vector<112x128xf32>
    %c0_5 = arith.constant 0 : index
    %c0_6 = arith.constant 0 : index
    %6 = vector.load %arg4[%c0_5, %c0_6] : memref<112x128xf32, #tpu.memory_space<vmem>>, vector<112x128xf32>
    tpu.vector_store %arg4[%c0_5, %c0_6], %5 {strides = array<i32>} : memref<112x128xf32, #tpu.memory_space<vmem>>, vector<112x128xf32>,
    return
  }
  func.func @transform_0(%arg0: i32) -> (i32, i32) {
    %c0_i32 = arith.constant 0 : i32
    %c0_i32_0 = arith.constant 0 : i32
    return %arg0, %c0_i32 : i32, i32
  }
  func.func @transform_1(%arg0: i32) -> (i32, i32) {
    %c0_i32 = arith.constant 0 : i32
    %c0_i32_0 = arith.constant 0 : i32
    %c0_i32_1 = arith.constant 0 : i32
    return %c0_i32, %c0_i32_0 : i32, i32
  }
  func.func @transform_2(%arg0: i32) -> (i32, i32) {
    %c0_i32 = arith.constant 0 : i32
    %c0_i32_0 = arith.constant 0 : i32
    %c0_i32_1 = arith.constant 0 : i32
    return %c0_i32, %c0_i32_0 : i32, i32
  }
  func.func @transform_3(%arg0: i32) -> (i32, i32) {
    %c0_i32 = arith.constant 0 : i32
    %c0_i32_0 = arith.constant 0 : i32
    return %arg0, %c0_i32 : i32, i32
  }
}

</mosaic_0001>

<llo_original>
// kernel: siamrpn_forward.7
$region0: #{siamrpn_forward.7}
  #allocation0 [shape = 'u32[]', space=smem, size = 0x4, offset = 0x4, fixed_abs, tag = 'smem constant byte address 0x4 - core index']
  #allocation1 [shape = 'u32[144,128]{1,0:T(1,128)}', space=vmem, size = 0x12000, scoped, tag = 'internal scratch']
  %s0 = inlined_call_operand.vmem [shape: bf16[448,32], index: 0, kind: input, shape index: {}]
  %s1 = inlined_call_operand.vmem [shape: bf16[32,128], index: 1, kind: input, shape index: {}]
  %s2 = inlined_call_operand.vmem [shape: f32[1,128], index: 2, kind: input, shape index: {}]
  %s3 = inlined_call_operand.vmem [shape: f32[448,128], index: 3, kind: output, shape index: {}]
  %s4 = sld [smem:[#allocation0]]
  $region45: #{siamrpn_forward.7} parent=0
    _
  %s6 = ssub.s32 1, %s4
  %s7 = scalar_select 0, %s6, %s4
  loop: start=0, step=1, limit=4
  $region2: #{siamrpn_forward.7} parent=0 // loop_pre_header
    _
  $region3: #{siamrpn_forward.7} parent=0 // loop_header
    %s9 = sphi 0, %s13
    %p10 = scmp.ge.s32.totalorder %s9, 4
    %s19 = sphi 0, %s21
    %s22 = sphi 0, %s19
    %s23 = sphi 0, %s22
    %s39 = sphi 0, %s23
    %s43 = sphi 0, %s43
    %s45 = sphi 0, %s43
    %s46 = sphi 0, %s45
    %s60 = sphi 0, %s46
    %s64 = sphi 0, %s64
    %s66 = sphi 0, %s64
    %s67 = sphi 0, %s66
    %s81 = sphi 0, %s67
    %s87 = sphi 0, %s89
    %s90 = sphi 0, %s87
    %s91 = sphi 0, %s90
    %s107 = sphi 0, %s91
  $region4: #{siamrpn_forward.7} parent=0 // loop_header_branch
    %12 = sbr.rel (%p10) target = $region8
  $region5: #{siamrpn_forward.7} parent=0 // loop_body
    %s14 = ssub.s32 %s9, 1
    %s15 = ssub.s32 %s9, 2
    %s16 = sadd.s32 %s9, 1
    %s17 = ssub.s32 %s9, %s16
    %p18 = scmp.eq.s32.totalorder %s17, 0
    %s20 = sadd.s32 %s19, 1
    %s21 = scalar_select %p18, %s19, %s20
    %p24 = pneg %p18
    %p25 = scmp.eq.s32.totalorder %s9, 1
    %p26 = por %p24, %p25
    %p27 = scmp.ne.s32.totalorder %s19, %s22
    %p28 = scmp.eq.s32.totalorder %s9, 0
    %p29 = por %p27, %p28
    %p30 = scmp.ne.s32.totalorder %s19, %s22
    %p31 = scmp.eq.s32.totalorder %s14, 1
    %p32 = por %p30, %p31
    %p33 = scmp.ne.s32.totalorder %s22, %s23
    %p34 = scmp.eq.s32.totalorder %s14, 0
    %p35 = por %p33, %p34
    %p36 = scmp.ne.s32.totalorder %s22, %s23
    %p37 = scmp.eq.s32.totalorder %s15, 1
    %p38 = por %p36, %p37
    %p40 = scmp.ne.s32.totalorder %s23, %s39
    %p41 = scmp.eq.s32.totalorder %s15, 0
    %p42 = por %p40, %p41
    %s44 = sadd.s32 %s43, 1
    %p47 = scmp.eq.s32.totalorder %s9, 1
    %p48 = scmp.ne.s32.totalorder %s43, %s45
    %p49 = scmp.eq.s32.totalorder %s9, 0
    %p50 = por %p48, %p49
    %p51 = scmp.ne.s32.totalorder %s43, %s45
    %p52 = scmp.eq.s32.totalorder %s14, 1
    %p53 = por %p51, %p52
    %p54 = scmp.ne.s32.totalorder %s45, %s46
    %p55 = scmp.eq.s32.totalorder %s14, 0
    %p56 = por %p54, %p55
    %p57 = scmp.ne.s32.totalorder %s45, %s46
    %p58 = scmp.eq.s32.totalorder %s15, 1
    %p59 = por %p57, %p58
    %p61 = scmp.ne.s32.totalorder %s46, %s60
    %p62 = scmp.eq.s32.totalorder %s15, 0
    %p63 = por %p61, %p62
    %s65 = sadd.s32 %s64, 1
    %p68 = scmp.eq.s32.totalorder %s9, 1
    %p69 = scmp.ne.s32.totalorder %s64, %s66
    %p70 = scmp.eq.s32.totalorder %s9, 0
    %p71 = por %p69, %p70
    %p72 = scmp.ne.s32.totalorder %s64, %s66
    %p73 = scmp.eq.s32.totalorder %s14, 1
    %p74 = por %p72, %p73
    %p75 = scmp.ne.s32.totalorder %s66, %s67
    %p76 = scmp.eq.s32.totalorder %s14, 0
    %p77 = por %p75, %p76
    %p78 = scmp.ne.s32.totalorder %s66, %s67
    %p79 = scmp.eq.s32.totalorder %s15, 1
    %p80 = por %p78, %p79
    %p82 = scmp.ne.s32.totalorder %s67, %s81
    %p83 = scmp.eq.s32.totalorder %s15, 0
    %p84 = por %p82, %p83
    %s85 = ssub.s32 %s9, %s16
    %p86 = scmp.eq.s32.totalorder %s85, 0
    %s88 = sadd.s32 %s87, 1
    %s89 = scalar_select %p86, %s87, %s88
    %p92 = pneg %p86
    %p93 = scmp.eq.s32.totalorder %s9, 1
    %p94 = por %p92, %p93
    %p95 = scmp.ne.s32.totalorder %s87, %s90
    %p96 = scmp.eq.s32.totalorder %s9, 0
    %p97 = por %p95, %p96
    %p98 = scmp.ne.s32.totalorder %s87, %s90
    %p99 = scmp.eq.s32.totalorder %s14, 1
    %p100 = por %p98, %p99
    %p101 = scmp.ne.s32.totalorder %s90, %s91
    %p102 = scmp.eq.s32.totalorder %s14, 0
    %p103 = por %p101, %p102
    %p104 = scmp.ne.s32.totalorder %s90, %s91
    %p105 = scmp.eq.s32.totalorder %s15, 1
    %p106 = por %p104, %p105
    %p108 = scmp.ne.s32.totalorder %s91, %s107
    %p109 = scmp.eq.s32.totalorder %s15, 0
    %p110 = por %p108, %p109
    %p111 = scmp.le.s32.totalorder 1, %s9
    %p112 = scmp.lt.s32.totalorder %s9, 3
    %p113 = pnand %p111, %p112
    %p114 = pneg %p113
    // Predicated region
    $region9: #{siamrpn_forward.7} parent=5 // pred_check
      _
    $region10: #{siamrpn_forward.7} parent=5 // pred_check_branch
      %116 = sbr.rel (%p113) target = $region12
    $region11: #{siamrpn_forward.7} parent=5 // pred_region
      %s117 = ssub.s32 %s9, 1
      // Predicated region
      $region13: #{siamrpn_forward.7} parent=11 // pred_check
        %p118 = pneg %p56
      $region14: #{siamrpn_forward.7} parent=11 // pred_check_branch
        %120 = sbr.rel (%p118) target = $region16
      $region15: #{siamrpn_forward.7} parent=11 // pred_region
        _
      $region16: #{siamrpn_forward.7} parent=11 // pred_fallthru
        _
      // Predicated region
      $region17: #{siamrpn_forward.7} parent=11 // pred_check
        %p121 = pneg %p77
      $region18: #{siamrpn_forward.7} parent=11 // pred_check_branch
        %123 = sbr.rel (%p121) target = $region20
      $region19: #{siamrpn_forward.7} parent=11 // pred_region
        _
      $region20: #{siamrpn_forward.7} parent=11 // pred_fallthru
        _
    $region12: #{siamrpn_forward.7} parent=5 // pred_fallthru
      _
    %p124 = scmp.lt.s32.totalorder %s9, 2
    // Predicated region
    $region21: #{siamrpn_forward.7} parent=5 // pred_check
      %p125 = pneg %p124
    $region22: #{siamrpn_forward.7} parent=5 // pred_check_branch
      %127 = sbr.rel (%p125) target = $region24
    $region23: #{siamrpn_forward.7} parent=5 // pred_region
      // Predicated region
      $region25: #{siamrpn_forward.7} parent=23 // pred_check
        %p128 = pneg %p29
      $region26: #{siamrpn_forward.7} parent=23 // pred_check_branch
        %130 = sbr.rel (%p128) target = $region28
      $region27: #{siamrpn_forward.7} parent=23 // pred_region
        %s131 = smul.u32 28, %s9
        %p132 = scmp.lt.s32.totalorder %s131, 55
        %s133 = scalar_select %p132, %s131, 55
        %s134 = smul.addr %s133, 4
        %s135 = scalar_lea.vmem %s0, %s134
        %s136 = smul.u32 28, %s9
      $region28: #{siamrpn_forward.7} parent=23 // pred_fallthru
        _
    $region24: #{siamrpn_forward.7} parent=5 // pred_fallthru
      _
    %p137 = scmp.le.s32.totalorder 1, %s9
    %p138 = scmp.lt.s32.totalorder %s9, 3
    %p139 = pnand %p137, %p138
    %p140 = pneg %p139
    // Predicated region
    $region29: #{siamrpn_forward.7} parent=5 // pred_check
      _
    $region30: #{siamrpn_forward.7} parent=5 // pred_check_branch
      %142 = sbr.rel (%p139) target = $region32
    $region31: #{siamrpn_forward.7} parent=5 // pred_region
      %s143 = ssub.s32 %s9, 1
      %s144 = smul.u32 28, %s14
      %p145 = scmp.lt.s32.totalorder %s144, 55
      %s146 = scalar_select %p145, %s144, 55
      %s147 = smul.addr %s146, 4
      %s148 = scalar_lea.vmem %s0, %s147
      %p149 = pneg %p35
      %p150 = pneg %p32
      %p151 = pneg %p56
      %p152 = pneg %p53
      %p153 = pneg %p77
      %p154 = pneg %p74
      %p155 = pneg %p103
      %p156 = pneg %p100
      %s157 = smul.u32 28, %s14
      %p158 = scmp.lt.s32.totalorder %s157, 55
      %s159 = scalar_select %p158, %s157, 55
      %s160 = smul.addr %s159, 8
      %s161 = scalar_lea.vmem %s3, %s160
      %s162 = smul.u32 28, %s14
      %p163 = scmp.lt.s32.totalorder %s162, 55
      %s164 = scalar_select %p163, %s162, 55
      %s165 = smul.addr %s164, 4
      %s166 = scalar_lea.vmem %s0, %s165
      %s167 = smul.u32 28, %s14
      %s168 = smul.u32 28, %s14
      %p169 = scmp.lt.s32.totalorder %s168, 55
      %s170 = scalar_select %p169, %s168, 55
      %s171 = smul.addr %s170, 8
      %s172 = scalar_lea.vmem %s3, %s171
      %s173 = smul.u32 28, %s14
      %v175 = vld [vmem:[%s166] sm:$0xf]
      %v176 = vld [vmem:[%s166 + $0x4] sm:$0xf]
      %v177 = vld [vmem:[%s166 + $0x8] sm:$0xf]
      %v178 = vld [vmem:[%s166 + $0xc] sm:$0xf]
      %v179 = vld [vmem:[%s166 + $0x10] sm:$0xf]
      %v180 = vld [vmem:[%s166 + $0x14] sm:$0xf]
      %v181 = vld [vmem:[%s166 + $0x18] sm:$0xf]
      %v182 = vld [vmem:[%s166 + $0x1c] sm:$0xf]
      %v183 = vld [vmem:[%s166 + $0x20] sm:$0xf]
      %v184 = vld [vmem:[%s166 + $0x24] sm:$0xf]
      %v185 = vld [vmem:[%s166 + $0x28] sm:$0xf]
      %v186 = vld [vmem:[%s166 + $0x2c] sm:$0xf]
      %v187 = vld [vmem:[%s166 + $0x30] sm:$0xf]
      %v188 = vld [vmem:[%s166 + $0x34] sm:$0xf]
      %v189 = vld [vmem:[%s166 + $0x38] sm:$0xf]
      %v190 = vld [vmem:[%s166 + $0x3c] sm:$0xf]
      %v191 = vld [vmem:[%s166 + $0x40] sm:$0xf]
      %v192 = vld [vmem:[%s166 + $0x44] sm:$0xf]
      %v193 = vld [vmem:[%s166 + $0x48] sm:$0xf]
      %v194 = vld [vmem:[%s166 + $0x4c] sm:$0xf]
      %v195 = vld [vmem:[%s166 + $0x50] sm:$0xf]
      %v196 = vld [vmem:[%s166 + $0x54] sm:$0xf]
      %v197 = vld [vmem:[%s166 + $0x58] sm:$0xf]
      %v198 = vld [vmem:[%s166 + $0x5c] sm:$0xf]
      %v199 = vld [vmem:[%s166 + $0x60] sm:$0xf]
      %v200 = vld [vmem:[%s166 + $0x64] sm:$0xf]
      %v201 = vld [vmem:[%s166 + $0x68] sm:$0xf]
      %v202 = vld [vmem:[%s166 + $0x6c] sm:$0xf]
      %v203 = vld [vmem:[%s1] sm:$0xf]
      %v204 = vld [vmem:[%s1 + $0x4] sm:$0xf]
      %v205 = vld [vmem:[%s1 + $0x8] sm:$0xf]
      %v206 = vld [vmem:[%s1 + $0xc] sm:$0xf]
      %v207 = vld [vmem:[%s2] sm:$0x1]
      %v209 = vlaneseq
      %v210 = vshrl.u32 %v209, 7
      %v211 = vsub.s32 0, %v210
      %v212 = vrot.slane %v207, %v211
      %v242 = vunpack.c.l.b16 %v175
      %v243 = vunpack.c.l.b16 %v176
      %v244 = vunpack.c.l.b16 %v177
      %v245 = vunpack.c.l.b16 %v178
      %v246 = vunpack.c.l.b16 %v179
      %v247 = vunpack.c.l.b16 %v180
      %v248 = vunpack.c.l.b16 %v181
      %v249 = vunpack.c.l.b16 %v182
      %v250 = vunpack.c.l.b16 %v183
      %v251 = vunpack.c.l.b16 %v184
      %v252 = vunpack.c.l.b16 %v185
      %v253 = vunpack.c.l.b16 %v186
      %v254 = vunpack.c.l.b16 %v187
      %v255 = vunpack.c.l.b16 %v188
      %v256 = vunpack.c.l.b16 %v189
      %v257 = vunpack.c.l.b16 %v190
      %v258 = vunpack.c.l.b16 %v191
      %v259 = vunpack.c.l.b16 %v192
      %v260 = vunpack.c.l.b16 %v193
      %v261 = vunpack.c.l.b16 %v194
      %v262 = vunpack.c.l.b16 %v195
      %v263 = vunpack.c.l.b16 %v196
      %v264 = vunpack.c.l.b16 %v197
      %v265 = vunpack.c.l.b16 %v198
      %v266 = vunpack.c.l.b16 %v199
      %v267 = vunpack.c.l.b16 %v200
      %v268 = vunpack.c.l.b16 %v201
      %v269 = vunpack.c.l.b16 %v202
      %v270 = vpack.c.b16 %v243, %v242
      %v271 = vpack.c.b16 %v245, %v244
      %v272 = vpack.c.b16 %v247, %v246
      %v273 = vpack.c.b16 %v249, %v248
      %v274 = vpack.c.b16 %v251, %v250
      %v275 = vpack.c.b16 %v253, %v252
      %v276 = vpack.c.b16 %v255, %v254
      %v277 = vpack.c.b16 %v257, %v256
      %v278 = vpack.c.b16 %v259, %v258
      %v279 = vpack.c.b16 %v261, %v260
      %v280 = vpack.c.b16 %v263, %v262
      %v281 = vpack.c.b16 %v265, %v264
      %v282 = vpack.c.b16 %v267, %v266
      %v283 = vpack.c.b16 %v269, %v268
      %v288 = vunpack.c.l.b16 %v203
      %v289 = vunpack.c.l.b16 %v204
      %v290 = vunpack.c.l.b16 %v205
      %v291 = vunpack.c.l.b16 %v206
      %v292 = vpack.c.b16 %v289, %v288
      %v293 = vpack.c.b16 %v291, %v290
      %vm296 = vcmask 261120
      %v298 = vsel %vm296, %v270, 0
      %v301 = vsel %vm296, %v271, 0
      %v304 = vsel %vm296, %v272, 0
      %v307 = vsel %vm296, %v273, 0
      %v310 = vsel %vm296, %v274, 0
      %v313 = vsel %vm296, %v275, 0
      %v316 = vsel %vm296, %v276, 0
      %v319 = vsel %vm296, %v277, 0
      %v322 = vsel %vm296, %v278, 0
      %v325 = vsel %vm296, %v279, 0
      %v328 = vsel %vm296, %v280, 0
      %v331 = vsel %vm296, %v281, 0
      %v334 = vsel %vm296, %v282, 0
      %v337 = vsel %vm296, %v283, 0
      %339 = vmatprep.subr.bf16.mxu0 0
      %340 = vmatpush1.bf16.msra.mxu0 %v292
      %341 = vmatprep.subr.bf16.mxu0 0
      %342 = vmatpush1.bf16.msra.mxu0 %v293
      %343 = vmatprep.subr.bf16.mxu0 0
      %344 = vmatpush1.bf16.msra.mxu0 0
      %345 = vmatprep.subr.bf16.mxu0 0
      %346 = vmatpush1.bf16.msra.mxu0 0
      %347 = vmatprep.subr.bf16.mxu0 0
      %348 = vmatpush1.bf16.msra.mxu0 0
      %349 = vmatprep.subr.bf16.mxu0 0
      %350 = vmatpush1.bf16.msra.mxu0 0
      %351 = vmatprep.subr.bf16.mxu0 0
      %352 = vmatpush1.bf16.msra.mxu0 0
      %353 = vmatprep.subr.bf16.mxu0 0
      %354 = vmatpush1.bf16.msra.mxu0 0
      %355 = vmatprep.subr.bf16.mxu0 0
      %356 = vmatpush1.bf16.msra.mxu0 0
      %357 = vmatprep.subr.bf16.mxu0 0
      %358 = vmatpush1.bf16.msra.mxu0 0
      %359 = vmatprep.subr.bf16.mxu0 0
      %360 = vmatpush1.bf16.msra.mxu0 0
      %361 = vmatprep.subr.bf16.mxu0 0
      %362 = vmatpush1.bf16.msra.mxu0 0
      %363 = vmatprep.subr.bf16.mxu0 0
      %364 = vmatpush1.bf16.msra.mxu0 0
      %365 = vmatprep.subr.bf16.mxu0 0
      %366 = vmatpush1.bf16.msra.mxu0 0
      %367 = vmatprep.subr.bf16.mxu0 0
      %368 = vmatpush1.bf16.msra.mxu0 0
      %369 = vmatprep.subr.bf16.mxu0 0
      %370 = vmatpush1.bf16.msra.mxu0 0
      %371 = vmatprep.mubr.bf16.mxu0 0
      %372 = vmatmul.mubr.bf16.gmra.mrb[0].mxu0 %v298
      %v373 = vpop.f32.mrb[0].mxu0
      %v374 = vadd.f32 %v212, %v373
      %v375 = vpop.f32.mrb[0].mxu0
      %v376 = vpop.f32.mrb[0].mxu0
      %v377 = vadd.f32 %v212, %v376
      %v378 = vpop.f32.mrb[0].mxu0
      %379 = vmatprep.mubr.bf16.mxu0 0
      %380 = vmatmul.mubr.bf16.gmra.mrb[0].mxu0 %v301
      %v381 = vpop.f32.mrb[0].mxu0
      %v382 = vadd.f32 %v212, %v381
      %v383 = vpop.f32.mrb[0].mxu0
      %v384 = vpop.f32.mrb[0].mxu0
      %v385 = vadd.f32 %v212, %v384
      %v386 = vpop.f32.mrb[0].mxu0
      %387 = vmatprep.mubr.bf16.mxu0 0
      %388 = vmatmul.mubr.bf16.gmra.mrb[0].mxu0 %v304
      %v389 = vpop.f32.mrb[0].mxu0
      %v390 = vadd.f32 %v212, %v389
      %v391 = vpop.f32.mrb[0].mxu0
      %v392 = vpop.f32.mrb[0].mxu0
      %v393 = vadd.f32 %v212, %v392
      %v394 = vpop.f32.mrb[0].mxu0
      %395 = vmatprep.mubr.bf16.mxu0 0
      %396 = vmatmul.mubr.bf16.gmra.mrb[0].mxu0 %v307
      %v397 = vpop.f32.mrb[0].mxu0
      %v398 = vadd.f32 %v212, %v397
      %v399 = vpop.f32.mrb[0].mxu0
      %v400 = vpop.f32.mrb[0].mxu0
      %v401 = vadd.f32 %v212, %v400
      %v402 = vpop.f32.mrb[0].mxu0
      %403 = vmatprep.mubr.bf16.mxu0 0
      %404 = vmatmul.mubr.bf16.gmra.mrb[0].mxu0 %v310
      %v405 = vpop.f32.mrb[0].mxu0
      %v406 = vadd.f32 %v212, %v405
      %v407 = vpop.f32.mrb[0].mxu0
      %v408 = vpop.f32.mrb[0].mxu0
      %v409 = vadd.f32 %v212, %v408
      %v410 = vpop.f32.mrb[0].mxu0
      %411 = vmatprep.mubr.bf16.mxu0 0
      %412 = vmatmul.mubr.bf16.gmra.mrb[0].mxu0 %v313
      %v413 = vpop.f32.mrb[0].mxu0
      %v414 = vadd.f32 %v212, %v413
      %v415 = vpop.f32.mrb[0].mxu0
      %v416 = vpop.f32.mrb[0].mxu0
      %v417 = vadd.f32 %v212, %v416
      %v418 = vpop.f32.mrb[0].mxu0
      %419 = vmatprep.mubr.bf16.mxu0 0
      %420 = vmatmul.mubr.bf16.gmra.mrb[0].mxu0 %v316
      %v421 = vpop.f32.mrb[0].mxu0
      %v422 = vadd.f32 %v212, %v421
      %v423 = vpop.f32.mrb[0].mxu0
      %v424 = vpop.f32.mrb[0].mxu0
      %v425 = vadd.f32 %v212, %v424
      %v426 = vpop.f32.mrb[0].mxu0
      %427 = vmatprep.mubr.bf16.mxu0 0
      %428 = vmatmul.mubr.bf16.gmra.mrb[0].mxu0 %v319
      %v429 = vpop.f32.mrb[0].mxu0
      %v430 = vadd.f32 %v212, %v429
      %v431 = vpop.f32.mrb[0].mxu0
      %v432 = vpop.f32.mrb[0].mxu0
      %v433 = vadd.f32 %v212, %v432
      %v434 = vpop.f32.mrb[0].mxu0
      %435 = vmatprep.mubr.bf16.mxu0 0
      %436 = vmatmul.mubr.bf16.gmra.mrb[0].mxu0 %v322
      %v437 = vpop.f32.mrb[0].mxu0
      %v438 = vadd.f32 %v212, %v437
      %v439 = vpop.f32.mrb[0].mxu0
      %v440 = vpop.f32.mrb[0].mxu0
      %v441 = vadd.f32 %v212, %v440
      %v442 = vpop.f32.mrb[0].mxu0
      %443 = vmatprep.mubr.bf16.mxu0 0
      %444 = vmatmul.mubr.bf16.gmra.mrb[0].mxu0 %v325
      %v445 = vpop.f32.mrb[0].mxu0
      %v446 = vadd.f32 %v212, %v445
      %v447 = vpop.f32.mrb[0].mxu0
      %v448 = vpop.f32.mrb[0].mxu0
      %v449 = vadd.f32 %v212, %v448
      %v450 = vpop.f32.mrb[0].mxu0
      %451 = vmatprep.mubr.bf16.mxu0 0
      %452 = vmatmul.mubr.bf16.gmra.mrb[0].mxu0 %v328
      %v453 = vpop.f32.mrb[0].mxu0
      %v454 = vadd.f32 %v212, %v453
      %v455 = vpop.f32.mrb[0].mxu0
      %v456 = vpop.f32.mrb[0].mxu0
      %v457 = vadd.f32 %v212, %v456
      %v458 = vpop.f32.mrb[0].mxu0
      %459 = vmatprep.mubr.bf16.mxu0 0
      %460 = vmatmul.mubr.bf16.gmra.mrb[0].mxu0 %v331
      %v461 = vpop.f32.mrb[0].mxu0
      %v462 = vadd.f32 %v212, %v461
      %v463 = vpop.f32.mrb[0].mxu0
      %v464 = vpop.f32.mrb[0].mxu0
      %v465 = vadd.f32 %v212, %v464
      %v466 = vpop.f32.mrb[0].mxu0
      %467 = vmatprep.mubr.bf16.mxu0 0
      %468 = vmatmul.mubr.bf16.gmra.mrb[0].mxu0 %v334
      %v469 = vpop.f32.mrb[0].mxu0
      %v470 = vadd.f32 %v212, %v469
      %v471 = vpop.f32.mrb[0].mxu0
      %v472 = vpop.f32.mrb[0].mxu0
      %v473 = vadd.f32 %v212, %v472
      %v474 = vpop.f32.mrb[0].mxu0
      %475 = vmatprep.mubr.bf16.mxu0 0
      %476 = vmatmul.mubr.bf16.gmra.mrb[0].mxu0 %v337
      %v477 = vpop.f32.mrb[0].mxu0
      %v478 = vadd.f32 %v212, %v477
      %v479 = vpop.f32.mrb[0].mxu0
      %v480 = vpop.f32.mrb[0].mxu0
      %v481 = vadd.f32 %v212, %v480
      %v482 = vpop.f32.mrb[0].mxu0
      %483 = vdwg.mxu0
      %v484 = vmax.f32 %v374, 0.0
      %v485 = vmax.f32 %v377, 0.0
      %v486 = vmax.f32 %v382, 0.0
      %v487 = vmax.f32 %v385, 0.0
      %v488 = vmax.f32 %v390, 0.0
      %v489 = vmax.f32 %v393, 0.0
      %v490 = vmax.f32 %v398, 0.0
      %v491 = vmax.f32 %v401, 0.0
      %v492 = vmax.f32 %v406, 0.0
      %v493 = vmax.f32 %v409, 0.0
      %v494 = vmax.f32 %v414, 0.0
      %v495 = vmax.f32 %v417, 0.0
      %v496 = vmax.f32 %v422, 0.0
      %v497 = vmax.f32 %v425, 0.0
      %v498 = vmax.f32 %v430, 0.0
      %v499 = vmax.f32 %v433, 0.0
      %v500 = vmax.f32 %v438, 0.0
      %v501 = vmax.f32 %v441, 0.0
      %v502 = vmax.f32 %v446, 0.0
      %v503 = vmax.f32 %v449, 0.0
      %v504 = vmax.f32 %v454, 0.0
      %v505 = vmax.f32 %v457, 0.0
      %v506 = vmax.f32 %v462, 0.0
      %v507 = vmax.f32 %v465, 0.0
      %v508 = vmax.f32 %v470, 0.0
      %v509 = vmax.f32 %v473, 0.0
      %v510 = vmax.f32 %v478, 0.0
      %v511 = vmax.f32 %v481, 0.0
      %512 = vst [vmem:[%s172] sm:$0xff] %v484
      %513 = vst [vmem:[%s172 + $0x8] sm:$0xff] %v485
      %514 = vst [vmem:[%s172 + $0x10] sm:$0xff] %v486
      %515 = vst [vmem:[%s172 + $0x18] sm:$0xff] %v487
      %516 = vst [vmem:[%s172 + $0x20] sm:$0xff] %v488
      %517 = vst [vmem:[%s172 + $0x28] sm:$0xff] %v489
      %518 = vst [vmem:[%s172 + $0x30] sm:$0xff] %v490
      %519 = vst [vmem:[%s172 + $0x38] sm:$0xff] %v491
      %520 = vst [vmem:[%s172 + $0x40] sm:$0xff] %v492
      %521 = vst [vmem:[%s172 + $0x48] sm:$0xff] %v493
      %522 = vst [vmem:[%s172 + $0x50] sm:$0xff] %v494
      %523 = vst [vmem:[%s172 + $0x58] sm:$0xff] %v495
      %524 = vst [vmem:[%s172 + $0x60] sm:$0xff] %v496
      %525 = vst [vmem:[%s172 + $0x68] sm:$0xff] %v497
      %526 = vst [vmem:[%s172 + $0x70] sm:$0xff] %v498
      %527 = vst [vmem:[%s172 + $0x78] sm:$0xff] %v499
      %528 = vst [vmem:[%s172 + $0x80] sm:$0xff] %v500
      %529 = vst [vmem:[%s172 + $0x88] sm:$0xff] %v501
      %530 = vst [vmem:[%s172 + $0x90] sm:$0xff] %v502
      %531 = vst [vmem:[%s172 + $0x98] sm:$0xff] %v503
      %532 = vst [vmem:[%s172 + $0xa0] sm:$0xff] %v504
      %533 = vst [vmem:[%s172 + $0xa8] sm:$0xff] %v505
      %534 = vst [vmem:[%s172 + $0xb0] sm:$0xff] %v506
      %535 = vst [vmem:[%s172 + $0xb8] sm:$0xff] %v507
      %536 = vst [vmem:[%s172 + $0xc0] sm:$0xff] %v508
      %537 = vst [vmem:[%s172 + $0xc8] sm:$0xff] %v509
      %538 = vst [vmem:[%s172 + $0xd0] sm:$0xff] %v510
      %539 = vst [vmem:[%s172 + $0xd8] sm:$0xff] %v511
      %s540 = smul.u32 28, %s14
      %p541 = scmp.lt.s32.totalorder %s540, 55
      %s542 = scalar_select %p541, %s540, 55
      %s543 = smul.addr %s542, 8
      %s544 = scalar_lea.vmem %s3, %s543
      // Predicated region
      $region33: #{siamrpn_forward.7} parent=31 // pred_check
        %p545 = pneg %p100
      $region34: #{siamrpn_forward.7} parent=31 // pred_check_branch
        %547 = sbr.rel (%p545) target = $region36
      $region35: #{siamrpn_forward.7} parent=31 // pred_region
        %s548 = smul.u32 28, %s14
      $region36: #{siamrpn_forward.7} parent=31 // pred_fallthru
        _
    $region32: #{siamrpn_forward.7} parent=5 // pred_fallthru
      _
    %p549 = scmp.le.s32.totalorder 2, %s9
    // Predicated region
    $region37: #{siamrpn_forward.7} parent=5 // pred_check
      %p550 = pneg %p549
    $region38: #{siamrpn_forward.7} parent=5 // pred_check_branch
      %552 = sbr.rel (%p550) target = $region40
    $region39: #{siamrpn_forward.7} parent=5 // pred_region
      %s553 = ssub.s32 %s9, 2
      // Predicated region
      $region41: #{siamrpn_forward.7} parent=39 // pred_check
        %p554 = pneg %p106
      $region42: #{siamrpn_forward.7} parent=39 // pred_check_branch
        %556 = sbr.rel (%p554) target = $region44
      $region43: #{siamrpn_forward.7} parent=39 // pred_region
        %s557 = smul.u32 28, %s15
        %p558 = scmp.lt.s32.totalorder %s557, 55
        %s559 = scalar_select %p558, %s557, 55
        %s560 = smul.addr %s559, 8
        %s561 = scalar_lea.vmem %s3, %s560
      $region44: #{siamrpn_forward.7} parent=39 // pred_fallthru
        _
    $region40: #{siamrpn_forward.7} parent=5 // pred_fallthru
      _
  $region6: #{siamrpn_forward.7} parent=0 // loop_footer
    %s13 = sadd.s32 1, %s9
  $region7: #{siamrpn_forward.7} parent=0 // loop_footer_branch
    %8 = sbr.rel target = $region3
  $region8: #{siamrpn_forward.7} parent=0 // loop_exit
    _

// kernel: siamrpn_forward.8
$region0: #{siamrpn_forward.8}
  #allocation0 [shape = 'u32[]', space=smem, size = 0x4, offset = 0x4, fixed_abs, tag = 'smem constant byte address 0x4 - core index']
  #allocation1 [shape = 'u32[144,128]{1,0:T(1,128)}', space=vmem, size = 0x12000, scoped, tag = 'internal scratch']
  %s0 = inlined_call_operand.vmem [shape: bf16[320,80], index: 0, kind: input, shape index: {}]
  %s1 = inlined_call_operand.vmem [shape: bf16[80,128], index: 1, kind: input, shape index: {}]
  %s2 = inlined_call_operand.vmem [shape: f32[1,128], index: 2, kind: input, shape index: {}]
  %s3 = inlined_call_operand.vmem [shape: f32[320,128], index: 3, kind: output, shape index: {}]
  %s4 = sld [smem:[#allocation0]]
  $region45: #{siamrpn_forward.8} parent=0
    _
  %s6 = ssub.s32 1, %s4
  %s7 = scalar_select 0, %s6, %s4
  loop: start=0, step=1, limit=4
  $region2: #{siamrpn_forward.8} parent=0 // loop_pre_header
    _
  $region3: #{siamrpn_forward.8} parent=0 // loop_header
    %s9 = sphi 0, %s13
    %p10 = scmp.ge.s32.totalorder %s9, 4
    %s19 = sphi 0, %s21
    %s22 = sphi 0, %s19
    %s23 = sphi 0, %s22
    %s39 = sphi 0, %s23
    %s43 = sphi 0, %s43
    %s45 = sphi 0, %s43
    %s46 = sphi 0, %s45
    %s60 = sphi 0, %s46
    %s64 = sphi 0, %s64
    %s66 = sphi 0, %s64
    %s67 = sphi 0, %s66
    %s81 = sphi 0, %s67
    %s87 = sphi 0, %s89
    %s90 = sphi 0, %s87
    %s91 = sphi 0, %s90
    %s107 = sphi 0, %s91
  $region4: #{siamrpn_forward.8} parent=0 // loop_header_branch
    %12 = sbr.rel (%p10) target = $region8
  $region5: #{siamrpn_forward.8} parent=0 // loop_body
    %s14 = ssub.s32 %s9, 1
    %s15 = ssub.s32 %s9, 2
    %s16 = sadd.s32 %s9, 1
    %s17 = ssub.s32 %s9, %s16
    %p18 = scmp.eq.s32.totalorder %s17, 0
    %s20 = sadd.s32 %s19, 1
    %s21 = scalar_select %p18, %s19, %s20
    %p24 = pneg %p18
    %p25 = scmp.eq.s32.totalorder %s9, 1
    %p26 = por %p24, %p25
    %p27 = scmp.ne.s32.totalorder %s19, %s22
    %p28 = scmp.eq.s32.totalorder %s9, 0
    %p29 = por %p27, %p28
    %p30 = scmp.ne.s32.totalorder %s19, %s22
    %p31 = scmp.eq.s32.totalorder %s14, 1
    %p32 = por %p30, %p31
    %p33 = scmp.ne.s32.totalorder %s22, %s23
    %p34 = scmp.eq.s32.totalorder %s14, 0
    %p35 = por %p33, %p34
    %p36 = scmp.ne.s32.totalorder %s22, %s23
    %p37 = scmp.eq.s32.totalorder %s15, 1
    %p38 = por %p36, %p37
    %p40 = scmp.ne.s32.totalorder %s23, %s39
    %p41 = scmp.eq.s32.totalorder %s15, 0
    %p42 = por %p40, %p41
    %s44 = sadd.s32 %s43, 1
    %p47 = scmp.eq.s32.totalorder %s9, 1
    %p48 = scmp.ne.s32.totalorder %s43, %s45
    %p49 = scmp.eq.s32.totalorder %s9, 0
    %p50 = por %p48, %p49
    %p51 = scmp.ne.s32.totalorder %s43, %s45
    %p52 = scmp.eq.s32.totalorder %s14, 1
    %p53 = por %p51, %p52
    %p54 = scmp.ne.s32.totalorder %s45, %s46
    %p55 = scmp.eq.s32.totalorder %s14, 0
    %p56 = por %p54, %p55
    %p57 = scmp.ne.s32.totalorder %s45, %s46
    %p58 = scmp.eq.s32.totalorder %s15, 1
    %p59 = por %p57, %p58
    %p61 = scmp.ne.s32.totalorder %s46, %s60
    %p62 = scmp.eq.s32.totalorder %s15, 0
    %p63 = por %p61, %p62
    %s65 = sadd.s32 %s64, 1
    %p68 = scmp.eq.s32.totalorder %s9, 1
    %p69 = scmp.ne.s32.totalorder %s64, %s66
    %p70 = scmp.eq.s32.totalorder %s9, 0
    %p71 = por %p69, %p70
    %p72 = scmp.ne.s32.totalorder %s64, %s66
    %p73 = scmp.eq.s32.totalorder %s14, 1
    %p74 = por %p72, %p73
    %p75 = scmp.ne.s32.totalorder %s66, %s67
    %p76 = scmp.eq.s32.totalorder %s14, 0
    %p77 = por %p75, %p76
    %p78 = scmp.ne.s32.totalorder %s66, %s67
    %p79 = scmp.eq.s32.totalorder %s15, 1
    %p80 = por %p78, %p79
    %p82 = scmp.ne.s32.totalorder %s67, %s81
    %p83 = scmp.eq.s32.totalorder %s15, 0
    %p84 = por %p82, %p83
    %s85 = ssub.s32 %s9, %s16
    %p86 = scmp.eq.s32.totalorder %s85, 0
    %s88 = sadd.s32 %s87, 1
    %s89 = scalar_select %p86, %s87, %s88
    %p92 = pneg %p86
    %p93 = scmp.eq.s32.totalorder %s9, 1
    %p94 = por %p92, %p93
    %p95 = scmp.ne.s32.totalorder %s87, %s90
    %p96 = scmp.eq.s32.totalorder %s9, 0
    %p97 = por %p95, %p96
    %p98 = scmp.ne.s32.totalorder %s87, %s90
    %p99 = scmp.eq.s32.totalorder %s14, 1
    %p100 = por %p98, %p99
    %p101 = scmp.ne.s32.totalorder %s90, %s91
    %p102 = scmp.eq.s32.totalorder %s14, 0
    %p103 = por %p101, %p102
    %p104 = scmp.ne.s32.totalorder %s90, %s91
    %p105 = scmp.eq.s32.totalorder %s15, 1
    %p106 = por %p104, %p105
    %p108 = scmp.ne.s32.totalorder %s91, %s107
    %p109 = scmp.eq.s32.totalorder %s15, 0
    %p110 = por %p108, %p109
    %p111 = scmp.le.s32.totalorder 1, %s9
    %p112 = scmp.lt.s32.totalorder %s9, 3
    %p113 = pnand %p111, %p112
    %p114 = pneg %p113
    // Predicated region
    $region9: #{siamrpn_forward.8} parent=5 // pred_check
      _
    $region10: #{siamrpn_forward.8} parent=5 // pred_check_branch
      %116 = sbr.rel (%p113) target = $region12
    $region11: #{siamrpn_forward.8} parent=5 // pred_region
      %s117 = ssub.s32 %s9, 1
      // Predicated region
      $region13: #{siamrpn_forward.8} parent=11 // pred_check
        %p118 = pneg %p56
      $region14: #{siamrpn_forward.8} parent=11 // pred_check_branch
        %120 = sbr.rel (%p118) target = $region16
      $region15: #{siamrpn_forward.8} parent=11 // pred_region
        _
      $region16: #{siamrpn_forward.8} parent=11 // pred_fallthru
        _
      // Predicated region
      $region17: #{siamrpn_forward.8} parent=11 // pred_check
        %p121 = pneg %p77
      $region18: #{siamrpn_forward.8} parent=11 // pred_check_branch
        %123 = sbr.rel (%p121) target = $region20
      $region19: #{siamrpn_forward.8} parent=11 // pred_region
        _
      $region20: #{siamrpn_forward.8} parent=11 // pred_fallthru
        _
    $region12: #{siamrpn_forward.8} parent=5 // pred_fallthru
      _
    %p124 = scmp.lt.s32.totalorder %s9, 2
    // Predicated region
    $region21: #{siamrpn_forward.8} parent=5 // pred_check
      %p125 = pneg %p124
    $region22: #{siamrpn_forward.8} parent=5 // pred_check_branch
      %127 = sbr.rel (%p125) target = $region24
    $region23: #{siamrpn_forward.8} parent=5 // pred_region
      // Predicated region
      $region25: #{siamrpn_forward.8} parent=23 // pred_check
        %p128 = pneg %p29
      $region26: #{siamrpn_forward.8} parent=23 // pred_check_branch
        %130 = sbr.rel (%p128) target = $region28
      $region27: #{siamrpn_forward.8} parent=23 // pred_region
        %s131 = smul.u32 20, %s9
        %p132 = scmp.lt.s32.totalorder %s131, 39
        %s133 = scalar_select %p132, %s131, 39
        %s134 = smul.addr %s133, 4
        %s135 = scalar_lea.vmem %s0, %s134
        %s136 = smul.u32 20, %s9
      $region28: #{siamrpn_forward.8} parent=23 // pred_fallthru
        _
    $region24: #{siamrpn_forward.8} parent=5 // pred_fallthru
      _
    %p137 = scmp.le.s32.totalorder 1, %s9
    %p138 = scmp.lt.s32.totalorder %s9, 3
    %p139 = pnand %p137, %p138
    %p140 = pneg %p139
    // Predicated region
    $region29: #{siamrpn_forward.8} parent=5 // pred_check
      _
    $region30: #{siamrpn_forward.8} parent=5 // pred_check_branch
      %142 = sbr.rel (%p139) target = $region32
    $region31: #{siamrpn_forward.8} parent=5 // pred_region
      %s143 = ssub.s32 %s9, 1
      %s144 = smul.u32 20, %s14
      %p145 = scmp.lt.s32.totalorder %s144, 39
      %s146 = scalar_select %p145, %s144, 39
      %s147 = smul.addr %s146, 4
      %s148 = scalar_lea.vmem %s0, %s147
      %p149 = pneg %p35
      %p150 = pneg %p32
      %p151 = pneg %p56
      %p152 = pneg %p53
      %p153 = pneg %p77
      %p154 = pneg %p74
      %p155 = pneg %p103
      %p156 = pneg %p100
      %s157 = smul.u32 20, %s14
      %p158 = scmp.lt.s32.totalorder %s157, 39
      %s159 = scalar_select %p158, %s157, 39
      %s160 = smul.addr %s159, 8
      %s161 = scalar_lea.vmem %s3, %s160
      %s162 = smul.u32 20, %s14
      %p163 = scmp.lt.s32.totalorder %s162, 39
      %s164 = scalar_select %p163, %s162, 39
      %s165 = smul.addr %s164, 4
      %s166 = scalar_lea.vmem %s0, %s165
      %s167 = smul.u32 20, %s14
      %s168 = smul.u32 20, %s14
      %p169 = scmp.lt.s32.totalorder %s168, 39
      %s170 = scalar_select %p169, %s168, 39
      %s171 = smul.addr %s170, 8
      %s172 = scalar_lea.vmem %s3, %s171
      %s173 = smul.u32 20, %s14
      %v175 = vld [vmem:[%s166] sm:$0xf]
      %v176 = vld [vmem:[%s166 + $0x4] sm:$0xf]
      %v177 = vld [vmem:[%s166 + $0x8] sm:$0xf]
      %v178 = vld [vmem:[%s166 + $0xc] sm:$0xf]
      %v179 = vld [vmem:[%s166 + $0x10] sm:$0xf]
      %v180 = vld [vmem:[%s166 + $0x14] sm:$0xf]
      %v181 = vld [vmem:[%s166 + $0x18] sm:$0xf]
      %v182 = vld [vmem:[%s166 + $0x1c] sm:$0xf]
      %v183 = vld [vmem:[%s166 + $0x20] sm:$0xf]
      %v184 = vld [vmem:[%s166 + $0x24] sm:$0xf]
      %v185 = vld [vmem:[%s166 + $0x28] sm:$0xf]
      %v186 = vld [vmem:[%s166 + $0x2c] sm:$0xf]
      %v187 = vld [vmem:[%s166 + $0x30] sm:$0xf]
      %v188 = vld [vmem:[%s166 + $0x34] sm:$0xf]
      %v189 = vld [vmem:[%s166 + $0x38] sm:$0xf]
      %v190 = vld [vmem:[%s166 + $0x3c] sm:$0xf]
      %v191 = vld [vmem:[%s166 + $0x40] sm:$0xf]
      %v192 = vld [vmem:[%s166 + $0x44] sm:$0xf]
      %v193 = vld [vmem:[%s166 + $0x48] sm:$0xf]
      %v194 = vld [vmem:[%s166 + $0x4c] sm:$0xf]
      %v195 = vld [vmem:[%s1] sm:$0xf]
      %v196 = vld [vmem:[%s1 + $0x4] sm:$0xf]
      %v197 = vld [vmem:[%s1 + $0x8] sm:$0xf]
      %v198 = vld [vmem:[%s1 + $0xc] sm:$0xf]
      %v199 = vld [vmem:[%s1 + $0x10] sm:$0xf]
      %v200 = vld [vmem:[%s1 + $0x14] sm:$0xf]
      %v201 = vld [vmem:[%s1 + $0x18] sm:$0xf]
      %v202 = vld [vmem:[%s1 + $0x1c] sm:$0xf]
      %v203 = vld [vmem:[%s1 + $0x20] sm:$0xf]
      %v204 = vld [vmem:[%s1 + $0x24] sm:$0xf]
      %v205 = vld [vmem:[%s2] sm:$0x1]
      %v207 = vlaneseq
      %v208 = vshrl.u32 %v207, 7
      %v209 = vsub.s32 0, %v208
      %v210 = vrot.slane %v205, %v209
      %v232 = vunpack.c.l.b16 %v175
      %v233 = vunpack.c.l.b16 %v176
      %v234 = vunpack.c.l.b16 %v177
      %v235 = vunpack.c.l.b16 %v178
      %v236 = vunpack.c.l.b16 %v179
      %v237 = vunpack.c.l.b16 %v180
      %v238 = vunpack.c.l.b16 %v181
      %v239 = vunpack.c.l.b16 %v182
      %v240 = vunpack.c.l.b16 %v183
      %v241 = vunpack.c.l.b16 %v184
      %v242 = vunpack.c.l.b16 %v185
      %v243 = vunpack.c.l.b16 %v186
      %v244 = vunpack.c.l.b16 %v187
      %v245 = vunpack.c.l.b16 %v188
      %v246 = vunpack.c.l.b16 %v189
      %v247 = vunpack.c.l.b16 %v190
      %v248 = vunpack.c.l.b16 %v191
      %v249 = vunpack.c.l.b16 %v192
      %v250 = vunpack.c.l.b16 %v193
      %v251 = vunpack.c.l.b16 %v194
      %v252 = vpack.c.b16 %v233, %v232
      %v253 = vpack.c.b16 %v235, %v234
      %v254 = vpack.c.b16 %v237, %v236
      %v255 = vpack.c.b16 %v239, %v238
      %v256 = vpack.c.b16 %v241, %v240
      %v257 = vpack.c.b16 %v243, %v242
      %v258 = vpack.c.b16 %v245, %v244
      %v259 = vpack.c.b16 %v247, %v246
      %v260 = vpack.c.b16 %v249, %v248
      %v261 = vpack.c.b16 %v251, %v250
      %v272 = vunpack.c.l.b16 %v195
      %v273 = vunpack.c.l.b16 %v196
      %v274 = vunpack.c.l.b16 %v197
      %v275 = vunpack.c.l.b16 %v198
      %v276 = vunpack.c.l.b16 %v199
      %v277 = vunpack.c.l.b16 %v200
      %v278 = vunpack.c.l.b16 %v201
      %v279 = vunpack.c.l.b16 %v202
      %v280 = vunpack.c.l.b16 %v203
      %v281 = vunpack.c.l.b16 %v204
      %v282 = vpack.c.b16 %v273, %v272
      %v283 = vpack.c.b16 %v275, %v274
      %v284 = vpack.c.b16 %v277, %v276
      %v285 = vpack.c.b16 %v279, %v278
      %v286 = vpack.c.b16 %v281, %v280
      %vm292 = vcmask 654336
      %v294 = vsel %vm292, %v252, 0
      %v297 = vsel %vm292, %v253, 0
      %v300 = vsel %vm292, %v254, 0
      %v303 = vsel %vm292, %v255, 0
      %v306 = vsel %vm292, %v256, 0
      %v309 = vsel %vm292, %v257, 0
      %v312 = vsel %vm292, %v258, 0
      %v315 = vsel %vm292, %v259, 0
      %v318 = vsel %vm292, %v260, 0
      %v321 = vsel %vm292, %v261, 0
      %323 = vmatprep.subr.bf16.mxu0 0
      %324 = vmatpush1.bf16.msra.mxu0 %v282
      %325 = vmatprep.subr.bf16.mxu0 0
      %326 = vmatpush1.bf16.msra.mxu0 %v283
      %327 = vmatprep.subr.bf16.mxu0 0
      %328 = vmatpush1.bf16.msra.mxu0 %v284
      %329 = vmatprep.subr.bf16.mxu0 0
      %330 = vmatpush1.bf16.msra.mxu0 %v285
      %331 = vmatprep.subr.bf16.mxu0 0
      %332 = vmatpush1.bf16.msra.mxu0 %v286
      %333 = vmatprep.subr.bf16.mxu0 0
      %334 = vmatpush1.bf16.msra.mxu0 0
      %335 = vmatprep.subr.bf16.mxu0 0
      %336 = vmatpush1.bf16.msra.mxu0 0
      %337 = vmatprep.subr.bf16.mxu0 0
      %338 = vmatpush1.bf16.msra.mxu0 0
      %339 = vmatprep.subr.bf16.mxu0 0
      %340 = vmatpush1.bf16.msra.mxu0 0
      %341 = vmatprep.subr.bf16.mxu0 0
      %342 = vmatpush1.bf16.msra.mxu0 0
      %343 = vmatprep.subr.bf16.mxu0 0
      %344 = vmatpush1.bf16.msra.mxu0 0
      %345 = vmatprep.subr.bf16.mxu0 0
      %346 = vmatpush1.bf16.msra.mxu0 0
      %347 = vmatprep.subr.bf16.mxu0 0
      %348 = vmatpush1.bf16.msra.mxu0 0
      %349 = vmatprep.subr.bf16.mxu0 0
      %350 = vmatpush1.bf16.msra.mxu0 0
      %351 = vmatprep.subr.bf16.mxu0 0
      %352 = vmatpush1.bf16.msra.mxu0 0
      %353 = vmatprep.subr.bf16.mxu0 0
      %354 = vmatpush1.bf16.msra.mxu0 0
      %355 = vmatprep.mubr.bf16.mxu0 0
      %356 = vmatmul.mubr.bf16.gmra.mrb[0].mxu0 %v294
      %v357 = vpop.f32.mrb[0].mxu0
      %v358 = vadd.f32 %v210, %v357
      %v359 = vpop.f32.mrb[0].mxu0
      %v360 = vpop.f32.mrb[0].mxu0
      %v361 = vadd.f32 %v210, %v360
      %v362 = vpop.f32.mrb[0].mxu0
      %363 = vmatprep.mubr.bf16.mxu0 0
      %364 = vmatmul.mubr.bf16.gmra.mrb[0].mxu0 %v297
      %v365 = vpop.f32.mrb[0].mxu0
      %v366 = vadd.f32 %v210, %v365
      %v367 = vpop.f32.mrb[0].mxu0
      %v368 = vpop.f32.mrb[0].mxu0
      %v369 = vadd.f32 %v210, %v368
      %v370 = vpop.f32.mrb[0].mxu0
      %371 = vmatprep.mubr.bf16.mxu0 0
      %372 = vmatmul.mubr.bf16.gmra.mrb[0].mxu0 %v300
      %v373 = vpop.f32.mrb[0].mxu0
      %v374 = vadd.f32 %v210, %v373
      %v375 = vpop.f32.mrb[0].mxu0
      %v376 = vpop.f32.mrb[0].mxu0
      %v377 = vadd.f32 %v210, %v376
      %v378 = vpop.f32.mrb[0].mxu0
      %379 = vmatprep.mubr.bf16.mxu0 0
      %380 = vmatmul.mubr.bf16.gmra.mrb[0].mxu0 %v303
      %v381 = vpop.f32.mrb[0].mxu0
      %v382 = vadd.f32 %v210, %v381
      %v383 = vpop.f32.mrb[0].mxu0
      %v384 = vpop.f32.mrb[0].mxu0
      %v385 = vadd.f32 %v210, %v384
      %v386 = vpop.f32.mrb[0].mxu0
      %387 = vmatprep.mubr.bf16.mxu0 0
      %388 = vmatmul.mubr.bf16.gmra.mrb[0].mxu0 %v306
      %v389 = vpop.f32.mrb[0].mxu0
      %v390 = vadd.f32 %v210, %v389
      %v391 = vpop.f32.mrb[0].mxu0
      %v392 = vpop.f32.mrb[0].mxu0
      %v393 = vadd.f32 %v210, %v392
      %v394 = vpop.f32.mrb[0].mxu0
      %395 = vmatprep.mubr.bf16.mxu0 0
      %396 = vmatmul.mubr.bf16.gmra.mrb[0].mxu0 %v309
      %v397 = vpop.f32.mrb[0].mxu0
      %v398 = vadd.f32 %v210, %v397
      %v399 = vpop.f32.mrb[0].mxu0
      %v400 = vpop.f32.mrb[0].mxu0
      %v401 = vadd.f32 %v210, %v400
      %v402 = vpop.f32.mrb[0].mxu0
      %403 = vmatprep.mubr.bf16.mxu0 0
      %404 = vmatmul.mubr.bf16.gmra.mrb[0].mxu0 %v312
      %v405 = vpop.f32.mrb[0].mxu0
      %v406 = vadd.f32 %v210, %v405
      %v407 = vpop.f32.mrb[0].mxu0
      %v408 = vpop.f32.mrb[0].mxu0
      %v409 = vadd.f32 %v210, %v408
      %v410 = vpop.f32.mrb[0].mxu0
      %411 = vmatprep.mubr.bf16.mxu0 0
      %412 = vmatmul.mubr.bf16.gmra.mrb[0].mxu0 %v315
      %v413 = vpop.f32.mrb[0].mxu0
      %v414 = vadd.f32 %v210, %v413
      %v415 = vpop.f32.mrb[0].mxu0
      %v416 = vpop.f32.mrb[0].mxu0
      %v417 = vadd.f32 %v210, %v416
      %v418 = vpop.f32.mrb[0].mxu0
      %419 = vmatprep.mubr.bf16.mxu0 0
      %420 = vmatmul.mubr.bf16.gmra.mrb[0].mxu0 %v318
      %v421 = vpop.f32.mrb[0].mxu0
      %v422 = vadd.f32 %v210, %v421
      %v423 = vpop.f32.mrb[0].mxu0
      %v424 = vpop.f32.mrb[0].mxu0
      %v425 = vadd.f32 %v210, %v424
      %v426 = vpop.f32.mrb[0].mxu0
      %427 = vmatprep.mubr.bf16.mxu0 0
      %428 = vmatmul.mubr.bf16.gmra.mrb[0].mxu0 %v321
      %v429 = vpop.f32.mrb[0].mxu0
      %v430 = vadd.f32 %v210, %v429
      %v431 = vpop.f32.mrb[0].mxu0
      %v432 = vpop.f32.mrb[0].mxu0
      %v433 = vadd.f32 %v210, %v432
      %v434 = vpop.f32.mrb[0].mxu0
      %435 = vdwg.mxu0
      %v436 = vmax.f32 %v358, 0.0
      %v437 = vmax.f32 %v361, 0.0
      %v438 = vmax.f32 %v366, 0.0
      %v439 = vmax.f32 %v369, 0.0
      %v440 = vmax.f32 %v374, 0.0
      %v441 = vmax.f32 %v377, 0.0
      %v442 = vmax.f32 %v382, 0.0
      %v443 = vmax.f32 %v385, 0.0
      %v444 = vmax.f32 %v390, 0.0
      %v445 = vmax.f32 %v393, 0.0
      %v446 = vmax.f32 %v398, 0.0
      %v447 = vmax.f32 %v401, 0.0
      %v448 = vmax.f32 %v406, 0.0
      %v449 = vmax.f32 %v409, 0.0
      %v450 = vmax.f32 %v414, 0.0
      %v451 = vmax.f32 %v417, 0.0
      %v452 = vmax.f32 %v422, 0.0
      %v453 = vmax.f32 %v425, 0.0
      %v454 = vmax.f32 %v430, 0.0
      %v455 = vmax.f32 %v433, 0.0
      %456 = vst [vmem:[%s172] sm:$0xff] %v436
      %457 = vst [vmem:[%s172 + $0x8] sm:$0xff] %v437
      %458 = vst [vmem:[%s172 + $0x10] sm:$0xff] %v438
      %459 = vst [vmem:[%s172 + $0x18] sm:$0xff] %v439
      %460 = vst [vmem:[%s172 + $0x20] sm:$0xff] %v440
      %461 = vst [vmem:[%s172 + $0x28] sm:$0xff] %v441
      %462 = vst [vmem:[%s172 + $0x30] sm:$0xff] %v442
      %463 = vst [vmem:[%s172 + $0x38] sm:$0xff] %v443
      %464 = vst [vmem:[%s172 + $0x40] sm:$0xff] %v444
      %465 = vst [vmem:[%s172 + $0x48] sm:$0xff] %v445
      %466 = vst [vmem:[%s172 + $0x50] sm:$0xff] %v446
      %467 = vst [vmem:[%s172 + $0x58] sm:$0xff] %v447
      %468 = vst [vmem:[%s172 + $0x60] sm:$0xff] %v448
      %469 = vst [vmem:[%s172 + $0x68] sm:$0xff] %v449
      %470 = vst [vmem:[%s172 + $0x70] sm:$0xff] %v450
      %471 = vst [vmem:[%s172 + $0x78] sm:$0xff] %v451
      %472 = vst [vmem:[%s172 + $0x80] sm:$0xff] %v452
      %473 = vst [vmem:[%s172 + $0x88] sm:$0xff] %v453
      %474 = vst [vmem:[%s172 + $0x90] sm:$0xff] %v454
      %475 = vst [vmem:[%s172 + $0x98] sm:$0xff] %v455
      %s476 = smul.u32 20, %s14
      %p477 = scmp.lt.s32.totalorder %s476, 39
      %s478 = scalar_select %p477, %s476, 39
      %s479 = smul.addr %s478, 8
      %s480 = scalar_lea.vmem %s3, %s479
      // Predicated region
      $region33: #{siamrpn_forward.8} parent=31 // pred_check
        %p481 = pneg %p100
      $region34: #{siamrpn_forward.8} parent=31 // pred_check_branch
        %483 = sbr.rel (%p481) target = $region36
      $region35: #{siamrpn_forward.8} parent=31 // pred_region
        %s484 = smul.u32 20, %s14
      $region36: #{siamrpn_forward.8} parent=31 // pred_fallthru
        _
    $region32: #{siamrpn_forward.8} parent=5 // pred_fallthru
      _
    %p485 = scmp.le.s32.totalorder 2, %s9
    // Predicated region
    $region37: #{siamrpn_forward.8} parent=5 // pred_check
      %p486 = pneg %p485
    $region38: #{siamrpn_forward.8} parent=5 // pred_check_branch
      %488 = sbr.rel (%p486) target = $region40
    $region39: #{siamrpn_forward.8} parent=5 // pred_region
      %s489 = ssub.s32 %s9, 2
      // Predicated region
      $region41: #{siamrpn_forward.8} parent=39 // pred_check
        %p490 = pneg %p106
      $region42: #{siamrpn_forward.8} parent=39 // pred_check_branch
        %492 = sbr.rel (%p490) target = $region44
      $region43: #{siamrpn_forward.8} parent=39 // pred_region
        %s493 = smul.u32 20, %s15
        %p494 = scmp.lt.s32.totalorder %s493, 39
        %s495 = scalar_select %p494, %s493, 39
        %s496 = smul.addr %s495, 8
        %s497 = scalar_lea.vmem %s3, %s496
      $region44: #{siamrpn_forward.8} parent=39 // pred_fallthru
        _
    $region40: #{siamrpn_forward.8} parent=5 // pred_fallthru
      _
  $region6: #{siamrpn_forward.8} parent=0 // loop_footer
    %s13 = sadd.s32 1, %s9
  $region7: #{siamrpn_forward.8} parent=0 // loop_footer_branch
    %8 = sbr.rel target = $region3
  $region8: #{siamrpn_forward.8} parent=0 // loop_exit
    _

// kernel: siamrpn_forward.9
$region0: #{siamrpn_forward.9}
  #allocation0 [shape = 'u32[]', space=smem, size = 0x4, offset = 0x4, fixed_abs, tag = 'smem constant byte address 0x4 - core index']
  #allocation1 [shape = 'u32[144,128]{1,0:T(1,128)}', space=vmem, size = 0x12000, scoped, tag = 'internal scratch']
  %s0 = inlined_call_operand.vmem [shape: bf16[192,80], index: 0, kind: input, shape index: {}]
  %s1 = inlined_call_operand.vmem [shape: bf16[80,128], index: 1, kind: input, shape index: {}]
  %s2 = inlined_call_operand.vmem [shape: f32[1,128], index: 2, kind: input, shape index: {}]
  %s3 = inlined_call_operand.vmem [shape: f32[192,128], index: 3, kind: output, shape index: {}]
  %s4 = sld [smem:[#allocation0]]
  $region22: #{siamrpn_forward.9} parent=0
    _
  %s6 = ssub.s32 1, %s4
  %s7 = scalar_select 0, %s6, %s4
  // Predicated region
  $region2: #{siamrpn_forward.9} parent=0 // pred_check
    _
  $region3: #{siamrpn_forward.9} parent=0 // pred_check_branch
    %9 = sbr.rel (0) target = $region5
  $region4: #{siamrpn_forward.9} parent=0 // pred_region
    _
  $region5: #{siamrpn_forward.9} parent=0 // pred_fallthru
    _
  // Predicated region
  $region6: #{siamrpn_forward.9} parent=0 // pred_check
    _
  $region7: #{siamrpn_forward.9} parent=0 // pred_check_branch
    %11 = sbr.rel (0) target = $region9
  $region8: #{siamrpn_forward.9} parent=0 // pred_region
    _
  $region9: #{siamrpn_forward.9} parent=0 // pred_fallthru
    _
  // Predicated region
  $region10: #{siamrpn_forward.9} parent=0 // pred_check
    _
  $region11: #{siamrpn_forward.9} parent=0 // pred_check_branch
    %13 = sbr.rel (0) target = $region13
  $region12: #{siamrpn_forward.9} parent=0 // pred_region
    _
  $region13: #{siamrpn_forward.9} parent=0 // pred_fallthru
    _
  %v15 = vld [vmem:[%s0] sm:$0xf]
  %v16 = vld [vmem:[%s0 + $0x4] sm:$0xf]
  %v17 = vld [vmem:[%s0 + $0x8] sm:$0xf]
  %v18 = vld [vmem:[%s0 + $0xc] sm:$0xf]
  %v19 = vld [vmem:[%s0 + $0x10] sm:$0xf]
  %v20 = vld [vmem:[%s0 + $0x14] sm:$0xf]
  %v21 = vld [vmem:[%s0 + $0x18] sm:$0xf]
  %v22 = vld [vmem:[%s0 + $0x1c] sm:$0xf]
  %v23 = vld [vmem:[%s0 + $0x20] sm:$0xf]
  %v24 = vld [vmem:[%s0 + $0x24] sm:$0xf]
  %v25 = vld [vmem:[%s0 + $0x28] sm:$0xf]
  %v26 = vld [vmem:[%s0 + $0x2c] sm:$0xf]
  %v27 = vld [vmem:[%s0 + $0x30] sm:$0xf]
  %v28 = vld [vmem:[%s0 + $0x34] sm:$0xf]
  %v29 = vld [vmem:[%s0 + $0x38] sm:$0xf]
  %v30 = vld [vmem:[%s0 + $0x3c] sm:$0xf]
  %v31 = vld [vmem:[%s0 + $0x40] sm:$0xf]
  %v32 = vld [vmem:[%s0 + $0x44] sm:$0xf]
  %v33 = vld [vmem:[%s0 + $0x48] sm:$0xf]
  %v34 = vld [vmem:[%s0 + $0x4c] sm:$0xf]
  %v35 = vld [vmem:[%s0 + $0x50] sm:$0xf]
  %v36 = vld [vmem:[%s0 + $0x54] sm:$0xf]
  %v37 = vld [vmem:[%s0 + $0x58] sm:$0xf]
  %v38 = vld [vmem:[%s0 + $0x5c] sm:$0xf]
  %v39 = vld [vmem:[%s1] sm:$0xf]
  %v40 = vld [vmem:[%s1 + $0x4] sm:$0xf]
  %v41 = vld [vmem:[%s1 + $0x8] sm:$0xf]
  %v42 = vld [vmem:[%s1 + $0xc] sm:$0xf]
  %v43 = vld [vmem:[%s1 + $0x10] sm:$0xf]
  %v44 = vld [vmem:[%s1 + $0x14] sm:$0xf]
  %v45 = vld [vmem:[%s1 + $0x18] sm:$0xf]
  %v46 = vld [vmem:[%s1 + $0x1c] sm:$0xf]
  %v47 = vld [vmem:[%s1 + $0x20] sm:$0xf]
  %v48 = vld [vmem:[%s1 + $0x24] sm:$0xf]
  %v49 = vld [vmem:[%s2] sm:$0x1]
  %v51 = vlaneseq
  %v52 = vshrl.u32 %v51, 7
  %v53 = vsub.s32 0, %v52
  %v54 = vrot.slane %v49, %v53
  %v80 = vunpack.c.l.b16 %v15
  %v81 = vunpack.c.l.b16 %v16
  %v82 = vunpack.c.l.b16 %v17
  %v83 = vunpack.c.l.b16 %v18
  %v84 = vunpack.c.l.b16 %v19
  %v85 = vunpack.c.l.b16 %v20
  %v86 = vunpack.c.l.b16 %v21
  %v87 = vunpack.c.l.b16 %v22
  %v88 = vunpack.c.l.b16 %v23
  %v89 = vunpack.c.l.b16 %v24
  %v90 = vunpack.c.l.b16 %v25
  %v91 = vunpack.c.l.b16 %v26
  %v92 = vunpack.c.l.b16 %v27
  %v93 = vunpack.c.l.b16 %v28
  %v94 = vunpack.c.l.b16 %v29
  %v95 = vunpack.c.l.b16 %v30
  %v96 = vunpack.c.l.b16 %v31
  %v97 = vunpack.c.l.b16 %v32
  %v98 = vunpack.c.l.b16 %v33
  %v99 = vunpack.c.l.b16 %v34
  %v100 = vunpack.c.l.b16 %v35
  %v101 = vunpack.c.l.b16 %v36
  %v102 = vunpack.c.l.b16 %v37
  %v103 = vunpack.c.l.b16 %v38
  %v104 = vpack.c.b16 %v81, %v80
  %v105 = vpack.c.b16 %v83, %v82
  %v106 = vpack.c.b16 %v85, %v84
  %v107 = vpack.c.b16 %v87, %v86
  %v108 = vpack.c.b16 %v89, %v88
  %v109 = vpack.c.b16 %v91, %v90
  %v110 = vpack.c.b16 %v93, %v92
  %v111 = vpack.c.b16 %v95, %v94
  %v112 = vpack.c.b16 %v97, %v96
  %v113 = vpack.c.b16 %v99, %v98
  %v114 = vpack.c.b16 %v101, %v100
  %v115 = vpack.c.b16 %v103, %v102
  %v126 = vunpack.c.l.b16 %v39
  %v127 = vunpack.c.l.b16 %v40
  %v128 = vunpack.c.l.b16 %v41
  %v129 = vunpack.c.l.b16 %v42
  %v130 = vunpack.c.l.b16 %v43
  %v131 = vunpack.c.l.b16 %v44
  %v132 = vunpack.c.l.b16 %v45
  %v133 = vunpack.c.l.b16 %v46
  %v134 = vunpack.c.l.b16 %v47
  %v135 = vunpack.c.l.b16 %v48
  %v136 = vpack.c.b16 %v127, %v126
  %v137 = vpack.c.b16 %v129, %v128
  %v138 = vpack.c.b16 %v131, %v130
  %v139 = vpack.c.b16 %v133, %v132
  %v140 = vpack.c.b16 %v135, %v134
  %vm146 = vcmask 654336
  %v148 = vsel %vm146, %v104, 0
  %v151 = vsel %vm146, %v105, 0
  %v154 = vsel %vm146, %v106, 0
  %v157 = vsel %vm146, %v107, 0
  %v160 = vsel %vm146, %v108, 0
  %v163 = vsel %vm146, %v109, 0
  %v166 = vsel %vm146, %v110, 0
  %v169 = vsel %vm146, %v111, 0
  %v172 = vsel %vm146, %v112, 0
  %v175 = vsel %vm146, %v113, 0
  %v178 = vsel %vm146, %v114, 0
  %v181 = vsel %vm146, %v115, 0
  %183 = vmatprep.subr.bf16.mxu0 0
  %184 = vmatpush1.bf16.msra.mxu0 %v136
  %185 = vmatprep.subr.bf16.mxu0 0
  %186 = vmatpush1.bf16.msra.mxu0 %v137
  %187 = vmatprep.subr.bf16.mxu0 0
  %188 = vmatpush1.bf16.msra.mxu0 %v138
  %189 = vmatprep.subr.bf16.mxu0 0
  %190 = vmatpush1.bf16.msra.mxu0 %v139
  %191 = vmatprep.subr.bf16.mxu0 0
  %192 = vmatpush1.bf16.msra.mxu0 %v140
  %193 = vmatprep.subr.bf16.mxu0 0
  %194 = vmatpush1.bf16.msra.mxu0 0
  %195 = vmatprep.subr.bf16.mxu0 0
  %196 = vmatpush1.bf16.msra.mxu0 0
  %197 = vmatprep.subr.bf16.mxu0 0
  %198 = vmatpush1.bf16.msra.mxu0 0
  %199 = vmatprep.subr.bf16.mxu0 0
  %200 = vmatpush1.bf16.msra.mxu0 0
  %201 = vmatprep.subr.bf16.mxu0 0
  %202 = vmatpush1.bf16.msra.mxu0 0
  %203 = vmatprep.subr.bf16.mxu0 0
  %204 = vmatpush1.bf16.msra.mxu0 0
  %205 = vmatprep.subr.bf16.mxu0 0
  %206 = vmatpush1.bf16.msra.mxu0 0
  %207 = vmatprep.subr.bf16.mxu0 0
  %208 = vmatpush1.bf16.msra.mxu0 0
  %209 = vmatprep.subr.bf16.mxu0 0
  %210 = vmatpush1.bf16.msra.mxu0 0
  %211 = vmatprep.subr.bf16.mxu0 0
  %212 = vmatpush1.bf16.msra.mxu0 0
  %213 = vmatprep.subr.bf16.mxu0 0
  %214 = vmatpush1.bf16.msra.mxu0 0
  %215 = vmatprep.mubr.bf16.mxu0 0
  %216 = vmatmul.mubr.bf16.gmra.mrb[0].mxu0 %v148
  %v217 = vpop.f32.mrb[0].mxu0
  %v218 = vadd.f32 %v54, %v217
  %v219 = vpop.f32.mrb[0].mxu0
  %v220 = vpop.f32.mrb[0].mxu0
  %v221 = vadd.f32 %v54, %v220
  %v222 = vpop.f32.mrb[0].mxu0
  %223 = vmatprep.mubr.bf16.mxu0 0
  %224 = vmatmul.mubr.bf16.gmra.mrb[0].mxu0 %v151
  %v225 = vpop.f32.mrb[0].mxu0
  %v226 = vadd.f32 %v54, %v225
  %v227 = vpop.f32.mrb[0].mxu0
  %v228 = vpop.f32.mrb[0].mxu0
  %v229 = vadd.f32 %v54, %v228
  %v230 = vpop.f32.mrb[0].mxu0
  %231 = vmatprep.mubr.bf16.mxu0 0
  %232 = vmatmul.mubr.bf16.gmra.mrb[0].mxu0 %v154
  %v233 = vpop.f32.mrb[0].mxu0
  %v234 = vadd.f32 %v54, %v233
  %v235 = vpop.f32.mrb[0].mxu0
  %v236 = vpop.f32.mrb[0].mxu0
  %v237 = vadd.f32 %v54, %v236
  %v238 = vpop.f32.mrb[0].mxu0
  %239 = vmatprep.mubr.bf16.mxu0 0
  %240 = vmatmul.mubr.bf16.gmra.mrb[0].mxu0 %v157
  %v241 = vpop.f32.mrb[0].mxu0
  %v242 = vadd.f32 %v54, %v241
  %v243 = vpop.f32.mrb[0].mxu0
  %v244 = vpop.f32.mrb[0].mxu0
  %v245 = vadd.f32 %v54, %v244
  %v246 = vpop.f32.mrb[0].mxu0
  %247 = vmatprep.mubr.bf16.mxu0 0
  %248 = vmatmul.mubr.bf16.gmra.mrb[0].mxu0 %v160
  %v249 = vpop.f32.mrb[0].mxu0
  %v250 = vadd.f32 %v54, %v249
  %v251 = vpop.f32.mrb[0].mxu0
  %v252 = vpop.f32.mrb[0].mxu0
  %v253 = vadd.f32 %v54, %v252
  %v254 = vpop.f32.mrb[0].mxu0
  %255 = vmatprep.mubr.bf16.mxu0 0
  %256 = vmatmul.mubr.bf16.gmra.mrb[0].mxu0 %v163
  %v257 = vpop.f32.mrb[0].mxu0
  %v258 = vadd.f32 %v54, %v257
  %v259 = vpop.f32.mrb[0].mxu0
  %v260 = vpop.f32.mrb[0].mxu0
  %v261 = vadd.f32 %v54, %v260
  %v262 = vpop.f32.mrb[0].mxu0
  %263 = vmatprep.mubr.bf16.mxu0 0
  %264 = vmatmul.mubr.bf16.gmra.mrb[0].mxu0 %v166
  %v265 = vpop.f32.mrb[0].mxu0
  %v266 = vadd.f32 %v54, %v265
  %v267 = vpop.f32.mrb[0].mxu0
  %v268 = vpop.f32.mrb[0].mxu0
  %v269 = vadd.f32 %v54, %v268
  %v270 = vpop.f32.mrb[0].mxu0
  %271 = vmatprep.mubr.bf16.mxu0 0
  %272 = vmatmul.mubr.bf16.gmra.mrb[0].mxu0 %v169
  %v273 = vpop.f32.mrb[0].mxu0
  %v274 = vadd.f32 %v54, %v273
  %v275 = vpop.f32.mrb[0].mxu0
  %v276 = vpop.f32.mrb[0].mxu0
  %v277 = vadd.f32 %v54, %v276
  %v278 = vpop.f32.mrb[0].mxu0
  %279 = vmatprep.mubr.bf16.mxu0 0
  %280 = vmatmul.mubr.bf16.gmra.mrb[0].mxu0 %v172
  %v281 = vpop.f32.mrb[0].mxu0
  %v282 = vadd.f32 %v54, %v281
  %v283 = vpop.f32.mrb[0].mxu0
  %v284 = vpop.f32.mrb[0].mxu0
  %v285 = vadd.f32 %v54, %v284
  %v286 = vpop.f32.mrb[0].mxu0
  %287 = vmatprep.mubr.bf16.mxu0 0
  %288 = vmatmul.mubr.bf16.gmra.mrb[0].mxu0 %v175
  %v289 = vpop.f32.mrb[0].mxu0
  %v290 = vadd.f32 %v54, %v289
  %v291 = vpop.f32.mrb[0].mxu0
  %v292 = vpop.f32.mrb[0].mxu0
  %v293 = vadd.f32 %v54, %v292
  %v294 = vpop.f32.mrb[0].mxu0
  %295 = vmatprep.mubr.bf16.mxu0 0
  %296 = vmatmul.mubr.bf16.gmra.mrb[0].mxu0 %v178
  %v297 = vpop.f32.mrb[0].mxu0
  %v298 = vadd.f32 %v54, %v297
  %v299 = vpop.f32.mrb[0].mxu0
  %v300 = vpop.f32.mrb[0].mxu0
  %v301 = vadd.f32 %v54, %v300
  %v302 = vpop.f32.mrb[0].mxu0
  %303 = vmatprep.mubr.bf16.mxu0 0
  %304 = vmatmul.mubr.bf16.gmra.mrb[0].mxu0 %v181
  %v305 = vpop.f32.mrb[0].mxu0
  %v306 = vadd.f32 %v54, %v305
  %v307 = vpop.f32.mrb[0].mxu0
  %v308 = vpop.f32.mrb[0].mxu0
  %v309 = vadd.f32 %v54, %v308
  %v310 = vpop.f32.mrb[0].mxu0
  %311 = vdwg.mxu0
  %312 = vst [vmem:[%s3] sm:$0xff] %v218
  %313 = vst [vmem:[%s3 + $0x8] sm:$0xff] %v221
  %314 = vst [vmem:[%s3 + $0x10] sm:$0xff] %v226
  %315 = vst [vmem:[%s3 + $0x18] sm:$0xff] %v229
  %316 = vst [vmem:[%s3 + $0x20] sm:$0xff] %v234
  %317 = vst [vmem:[%s3 + $0x28] sm:$0xff] %v237
  %318 = vst [vmem:[%s3 + $0x30] sm:$0xff] %v242
  %319 = vst [vmem:[%s3 + $0x38] sm:$0xff] %v245
  %320 = vst [vmem:[%s3 + $0x40] sm:$0xff] %v250
  %321 = vst [vmem:[%s3 + $0x48] sm:$0xff] %v253
  %322 = vst [vmem:[%s3 + $0x50] sm:$0xff] %v258
  %323 = vst [vmem:[%s3 + $0x58] sm:$0xff] %v261
  %324 = vst [vmem:[%s3 + $0x60] sm:$0xff] %v266
  %325 = vst [vmem:[%s3 + $0x68] sm:$0xff] %v269
  %326 = vst [vmem:[%s3 + $0x70] sm:$0xff] %v274
  %327 = vst [vmem:[%s3 + $0x78] sm:$0xff] %v277
  %328 = vst [vmem:[%s3 + $0x80] sm:$0xff] %v282
  %329 = vst [vmem:[%s3 + $0x88] sm:$0xff] %v285
  %330 = vst [vmem:[%s3 + $0x90] sm:$0xff] %v290
  %331 = vst [vmem:[%s3 + $0x98] sm:$0xff] %v293
  %332 = vst [vmem:[%s3 + $0xa0] sm:$0xff] %v298
  %333 = vst [vmem:[%s3 + $0xa8] sm:$0xff] %v301
  %334 = vst [vmem:[%s3 + $0xb0] sm:$0xff] %v306
  %335 = vst [vmem:[%s3 + $0xb8] sm:$0xff] %v309
  // Predicated region
  $region14: #{siamrpn_forward.9} parent=0 // pred_check
    _
  $region15: #{siamrpn_forward.9} parent=0 // pred_check_branch
    %337 = sbr.rel (0) target = $region17
  $region16: #{siamrpn_forward.9} parent=0 // pred_region
    _
  $region17: #{siamrpn_forward.9} parent=0 // pred_fallthru
    _
  // Predicated region
  $region18: #{siamrpn_forward.9} parent=0 // pred_check
    _
  $region19: #{siamrpn_forward.9} parent=0 // pred_check_branch
    %339 = sbr.rel (0) target = $region21
  $region20: #{siamrpn_forward.9} parent=0 // pred_region
    _
  $region21: #{siamrpn_forward.9} parent=0 // pred_fallthru
    _

// kernel: siamrpn_forward.10
$region0: #{siamrpn_forward.10}
  #allocation0 [shape = 'u32[]', space=smem, size = 0x4, offset = 0x4, fixed_abs, tag = 'smem constant byte address 0x4 - core index']
  #allocation1 [shape = 'u32[144,128]{1,0:T(1,128)}', space=vmem, size = 0x12000, scoped, tag = 'internal scratch']
  %s0 = inlined_call_operand.vmem [shape: bf16[16,80], index: 0, kind: input, shape index: {}]
  %s1 = inlined_call_operand.vmem [shape: bf16[80,256], index: 1, kind: input, shape index: {}]
  %s2 = inlined_call_operand.vmem [shape: f32[1,256], index: 2, kind: input, shape index: {}]
  %s3 = inlined_call_operand.vmem [shape: f32[16,256], index: 3, kind: output, shape index: {}]
  %s4 = sld [smem:[#allocation0]]
  $region22: #{siamrpn_forward.10} parent=0
    _
  %s6 = ssub.s32 1, %s4
  %s7 = scalar_select 0, %s6, %s4
  // Predicated region
  $region2: #{siamrpn_forward.10} parent=0 // pred_check
    _
  $region3: #{siamrpn_forward.10} parent=0 // pred_check_branch
    %9 = sbr.rel (0) target = $region5
  $region4: #{siamrpn_forward.10} parent=0 // pred_region
    _
  $region5: #{siamrpn_forward.10} parent=0 // pred_fallthru
    _
  // Predicated region
  $region6: #{siamrpn_forward.10} parent=0 // pred_check
    _
  $region7: #{siamrpn_forward.10} parent=0 // pred_check_branch
    %11 = sbr.rel (0) target = $region9
  $region8: #{siamrpn_forward.10} parent=0 // pred_region
    _
  $region9: #{siamrpn_forward.10} parent=0 // pred_fallthru
    _
  // Predicated region
  $region10: #{siamrpn_forward.10} parent=0 // pred_check
    _
  $region11: #{siamrpn_forward.10} parent=0 // pred_check_branch
    %13 = sbr.rel (0) target = $region13
  $region12: #{siamrpn_forward.10} parent=0 // pred_region
    _
  $region13: #{siamrpn_forward.10} parent=0 // pred_fallthru
    _
  %v15 = vld [vmem:[%s0] sm:$0xf]
  %v16 = vld [vmem:[%s0 + $0x4] sm:$0xf]
  %v17 = vld [vmem:[%s1] sm:$0xff]
  %v18 = vld [vmem:[%s1 + $0x8] sm:$0xff]
  %v19 = vld [vmem:[%s1 + $0x10] sm:$0xff]
  %v20 = vld [vmem:[%s1 + $0x18] sm:$0xff]
  %v21 = vld [vmem:[%s1 + $0x20] sm:$0xff]
  %v22 = vld [vmem:[%s1 + $0x28] sm:$0xff]
  %v23 = vld [vmem:[%s1 + $0x30] sm:$0xff]
  %v24 = vld [vmem:[%s1 + $0x38] sm:$0xff]
  %v25 = vld [vmem:[%s1 + $0x40] sm:$0xff]
  %v26 = vld [vmem:[%s1 + $0x48] sm:$0xff]
  %v27 = vld [vmem:[%s2] sm:$0x3]
  %v29 = vlaneseq
  %v30 = vshrl.u32 %v29, 7
  %v31 = vsub.s32 0, %v30
  %v32 = vrot.slane %v27, %v31
  %v33 = vlaneseq
  %v34 = vshrl.u32 %v33, 7
  %v35 = vsub.s32 1, %v34
  %v36 = vrot.slane %v27, %v35
  %v41 = vunpack.c.l.b16 %v15
  %v42 = vunpack.c.l.b16 %v16
  %v43 = vpack.c.b16 %v42, %v41
  %v54 = vunpack.c.l.b16 %v17
  %v55 = vunpack.c.h.b16 %v17
  %v56 = vunpack.c.l.b16 %v18
  %v57 = vunpack.c.h.b16 %v18
  %v58 = vunpack.c.l.b16 %v19
  %v59 = vunpack.c.h.b16 %v19
  %v60 = vunpack.c.l.b16 %v20
  %v61 = vunpack.c.h.b16 %v20
  %v62 = vunpack.c.l.b16 %v21
  %v63 = vunpack.c.h.b16 %v21
  %v64 = vunpack.c.l.b16 %v22
  %v65 = vunpack.c.h.b16 %v22
  %v66 = vunpack.c.l.b16 %v23
  %v67 = vunpack.c.h.b16 %v23
  %v68 = vunpack.c.l.b16 %v24
  %v69 = vunpack.c.h.b16 %v24
  %v70 = vunpack.c.l.b16 %v25
  %v71 = vunpack.c.h.b16 %v25
  %v72 = vunpack.c.l.b16 %v26
  %v73 = vunpack.c.h.b16 %v26
  %v74 = vpack.c.b16 %v56, %v54
  %v75 = vpack.c.b16 %v57, %v55
  %v76 = vpack.c.b16 %v60, %v58
  %v77 = vpack.c.b16 %v61, %v59
  %v78 = vpack.c.b16 %v64, %v62
  %v79 = vpack.c.b16 %v65, %v63
  %v80 = vpack.c.b16 %v68, %v66
  %v81 = vpack.c.b16 %v69, %v67
  %v82 = vpack.c.b16 %v72, %v70
  %v83 = vpack.c.b16 %v73, %v71
  %vm94 = vcmask 654336
  %v96 = vsel %vm94, %v43, 0
  %98 = vmatprep.subr.bf16.mxu0 %v75
  %99 = vmatpush1.bf16.msra.mxu0 %v74
  %100 = vmatprep.subr.bf16.mxu0 %v77
  %101 = vmatpush1.bf16.msra.mxu0 %v76
  %102 = vmatprep.subr.bf16.mxu0 %v79
  %103 = vmatpush1.bf16.msra.mxu0 %v78
  %104 = vmatprep.subr.bf16.mxu0 %v81
  %105 = vmatpush1.bf16.msra.mxu0 %v80
  %106 = vmatprep.subr.bf16.mxu0 %v83
  %107 = vmatpush1.bf16.msra.mxu0 %v82
  %108 = vmatprep.subr.bf16.mxu0 0
  %109 = vmatpush1.bf16.msra.mxu0 0
  %110 = vmatprep.subr.bf16.mxu0 0
  %111 = vmatpush1.bf16.msra.mxu0 0
  %112 = vmatprep.subr.bf16.mxu0 0
  %113 = vmatpush1.bf16.msra.mxu0 0
  %114 = vmatprep.subr.bf16.mxu0 0
  %115 = vmatpush1.bf16.msra.mxu0 0
  %116 = vmatprep.subr.bf16.mxu0 0
  %117 = vmatpush1.bf16.msra.mxu0 0
  %118 = vmatprep.subr.bf16.mxu0 0
  %119 = vmatpush1.bf16.msra.mxu0 0
  %120 = vmatprep.subr.bf16.mxu0 0
  %121 = vmatpush1.bf16.msra.mxu0 0
  %122 = vmatprep.subr.bf16.mxu0 0
  %123 = vmatpush1.bf16.msra.mxu0 0
  %124 = vmatprep.subr.bf16.mxu0 0
  %125 = vmatpush1.bf16.msra.mxu0 0
  %126 = vmatprep.subr.bf16.mxu0 0
  %127 = vmatpush1.bf16.msra.mxu0 0
  %128 = vmatprep.subr.bf16.mxu0 0
  %129 = vmatpush1.bf16.msra.mxu0 0
  %130 = vmatprep.mubr.bf16.mxu0 0
  %131 = vmatmul.mubr.bf16.gmra.mrb[0].mxu0 %v96
  %v132 = vpop.f32.mrb[0].mxu0
  %v133 = vadd.f32 %v32, %v132
  %v134 = vpop.f32.mrb[0].mxu0
  %v135 = vadd.f32 %v36, %v134
  %v136 = vpop.f32.mrb[0].mxu0
  %v137 = vadd.f32 %v32, %v136
  %v138 = vpop.f32.mrb[0].mxu0
  %v139 = vadd.f32 %v36, %v138
  %140 = vdwg.mxu0
  %141 = vst [vmem:[%s3] sm:$0xff] %v133
  %142 = vst [vmem:[%s3 + $0x8] sm:$0xff] %v135
  %143 = vst [vmem:[%s3 + $0x10] sm:$0xff] %v137
  %144 = vst [vmem:[%s3 + $0x18] sm:$0xff] %v139
  // Predicated region
  $region14: #{siamrpn_forward.10} parent=0 // pred_check
    _
  $region15: #{siamrpn_forward.10} parent=0 // pred_check_branch
    %146 = sbr.rel (0) target = $region17
  $region16: #{siamrpn_forward.10} parent=0 // pred_region
    _
  $region17: #{siamrpn_forward.10} parent=0 // pred_fallthru
    _
  // Predicated region
  $region18: #{siamrpn_forward.10} parent=0 // pred_check
    _
  $region19: #{siamrpn_forward.10} parent=0 // pred_check_branch
    %148 = sbr.rel (0) target = $region21
  $region20: #{siamrpn_forward.10} parent=0 // pred_region
    _
  $region21: #{siamrpn_forward.10} parent=0 // pred_fallthru
    _

// kernel: siamrpn_forward.11
$region0: #{siamrpn_forward.11}
  #allocation0 [shape = 'u32[]', space=smem, size = 0x4, offset = 0x4, fixed_abs, tag = 'smem constant byte address 0x4 - core index']
  #allocation1 [shape = 'u32[144,128]{1,0:T(1,128)}', space=vmem, size = 0x12000, scoped, tag = 'internal scratch']
  %s0 = inlined_call_operand.vmem [shape: bf16[112,80], index: 0, kind: input, shape index: {}]
  %s1 = inlined_call_operand.vmem [shape: bf16[80,128], index: 1, kind: input, shape index: {}]
  %s2 = inlined_call_operand.vmem [shape: f32[1,128], index: 2, kind: input, shape index: {}]
  %s3 = inlined_call_operand.vmem [shape: f32[112,128], index: 3, kind: output, shape index: {}]
  %s4 = sld [smem:[#allocation0]]
  $region22: #{siamrpn_forward.11} parent=0
    _
  %s6 = ssub.s32 1, %s4
  %s7 = scalar_select 0, %s6, %s4
  // Predicated region
  $region2: #{siamrpn_forward.11} parent=0 // pred_check
    _
  $region3: #{siamrpn_forward.11} parent=0 // pred_check_branch
    %9 = sbr.rel (0) target = $region5
  $region4: #{siamrpn_forward.11} parent=0 // pred_region
    _
  $region5: #{siamrpn_forward.11} parent=0 // pred_fallthru
    _
  // Predicated region
  $region6: #{siamrpn_forward.11} parent=0 // pred_check
    _
  $region7: #{siamrpn_forward.11} parent=0 // pred_check_branch
    %11 = sbr.rel (0) target = $region9
  $region8: #{siamrpn_forward.11} parent=0 // pred_region
    _
  $region9: #{siamrpn_forward.11} parent=0 // pred_fallthru
    _
  // Predicated region
  $region10: #{siamrpn_forward.11} parent=0 // pred_check
    _
  $region11: #{siamrpn_forward.11} parent=0 // pred_check_branch
    %13 = sbr.rel (0) target = $region13
  $region12: #{siamrpn_forward.11} parent=0 // pred_region
    _
  $region13: #{siamrpn_forward.11} parent=0 // pred_fallthru
    _
  %v15 = vld [vmem:[%s0] sm:$0xf]
  %v16 = vld [vmem:[%s0 + $0x4] sm:$0xf]
  %v17 = vld [vmem:[%s0 + $0x8] sm:$0xf]
  %v18 = vld [vmem:[%s0 + $0xc] sm:$0xf]
  %v19 = vld [vmem:[%s0 + $0x10] sm:$0xf]
  %v20 = vld [vmem:[%s0 + $0x14] sm:$0xf]
  %v21 = vld [vmem:[%s0 + $0x18] sm:$0xf]
  %v22 = vld [vmem:[%s0 + $0x1c] sm:$0xf]
  %v23 = vld [vmem:[%s0 + $0x20] sm:$0xf]
  %v24 = vld [vmem:[%s0 + $0x24] sm:$0xf]
  %v25 = vld [vmem:[%s0 + $0x28] sm:$0xf]
  %v26 = vld [vmem:[%s0 + $0x2c] sm:$0xf]
  %v27 = vld [vmem:[%s0 + $0x30] sm:$0xf]
  %v28 = vld [vmem:[%s0 + $0x34] sm:$0xf]
  %v29 = vld [vmem:[%s1] sm:$0xf]
  %v30 = vld [vmem:[%s1 + $0x4] sm:$0xf]
  %v31 = vld [vmem:[%s1 + $0x8] sm:$0xf]
  %v32 = vld [vmem:[%s1 + $0xc] sm:$0xf]
  %v33 = vld [vmem:[%s1 + $0x10] sm:$0xf]
  %v34 = vld [vmem:[%s1 + $0x14] sm:$0xf]
  %v35 = vld [vmem:[%s1 + $0x18] sm:$0xf]
  %v36 = vld [vmem:[%s1 + $0x1c] sm:$0xf]
  %v37 = vld [vmem:[%s1 + $0x20] sm:$0xf]
  %v38 = vld [vmem:[%s1 + $0x24] sm:$0xf]
  %v39 = vld [vmem:[%s2] sm:$0x1]
  %v41 = vlaneseq
  %v42 = vshrl.u32 %v41, 7
  %v43 = vsub.s32 0, %v42
  %v44 = vrot.slane %v39, %v43
  %v60 = vunpack.c.l.b16 %v15
  %v61 = vunpack.c.l.b16 %v16
  %v62 = vunpack.c.l.b16 %v17
  %v63 = vunpack.c.l.b16 %v18
  %v64 = vunpack.c.l.b16 %v19
  %v65 = vunpack.c.l.b16 %v20
  %v66 = vunpack.c.l.b16 %v21
  %v67 = vunpack.c.l.b16 %v22
  %v68 = vunpack.c.l.b16 %v23
  %v69 = vunpack.c.l.b16 %v24
  %v70 = vunpack.c.l.b16 %v25
  %v71 = vunpack.c.l.b16 %v26
  %v72 = vunpack.c.l.b16 %v27
  %v73 = vunpack.c.l.b16 %v28
  %v74 = vpack.c.b16 %v61, %v60
  %v75 = vpack.c.b16 %v63, %v62
  %v76 = vpack.c.b16 %v65, %v64
  %v77 = vpack.c.b16 %v67, %v66
  %v78 = vpack.c.b16 %v69, %v68
  %v79 = vpack.c.b16 %v71, %v70
  %v80 = vpack.c.b16 %v73, %v72
  %v91 = vunpack.c.l.b16 %v29
  %v92 = vunpack.c.l.b16 %v30
  %v93 = vunpack.c.l.b16 %v31
  %v94 = vunpack.c.l.b16 %v32
  %v95 = vunpack.c.l.b16 %v33
  %v96 = vunpack.c.l.b16 %v34
  %v97 = vunpack.c.l.b16 %v35
  %v98 = vunpack.c.l.b16 %v36
  %v99 = vunpack.c.l.b16 %v37
  %v100 = vunpack.c.l.b16 %v38
  %v101 = vpack.c.b16 %v92, %v91
  %v102 = vpack.c.b16 %v94, %v93
  %v103 = vpack.c.b16 %v96, %v95
  %v104 = vpack.c.b16 %v98, %v97
  %v105 = vpack.c.b16 %v100, %v99
  %vm111 = vcmask 654336
  %v113 = vsel %vm111, %v74, 0
  %v116 = vsel %vm111, %v75, 0
  %v119 = vsel %vm111, %v76, 0
  %v122 = vsel %vm111, %v77, 0
  %v125 = vsel %vm111, %v78, 0
  %v128 = vsel %vm111, %v79, 0
  %v131 = vsel %vm111, %v80, 0
  %133 = vmatprep.subr.bf16.mxu0 0
  %134 = vmatpush1.bf16.msra.mxu0 %v101
  %135 = vmatprep.subr.bf16.mxu0 0
  %136 = vmatpush1.bf16.msra.mxu0 %v102
  %137 = vmatprep.subr.bf16.mxu0 0
  %138 = vmatpush1.bf16.msra.mxu0 %v103
  %139 = vmatprep.subr.bf16.mxu0 0
  %140 = vmatpush1.bf16.msra.mxu0 %v104
  %141 = vmatprep.subr.bf16.mxu0 0
  %142 = vmatpush1.bf16.msra.mxu0 %v105
  %143 = vmatprep.subr.bf16.mxu0 0
  %144 = vmatpush1.bf16.msra.mxu0 0
  %145 = vmatprep.subr.bf16.mxu0 0
  %146 = vmatpush1.bf16.msra.mxu0 0
  %147 = vmatprep.subr.bf16.mxu0 0
  %148 = vmatpush1.bf16.msra.mxu0 0
  %149 = vmatprep.subr.bf16.mxu0 0
  %150 = vmatpush1.bf16.msra.mxu0 0
  %151 = vmatprep.subr.bf16.mxu0 0
  %152 = vmatpush1.bf16.msra.mxu0 0
  %153 = vmatprep.subr.bf16.mxu0 0
  %154 = vmatpush1.bf16.msra.mxu0 0
  %155 = vmatprep.subr.bf16.mxu0 0
  %156 = vmatpush1.bf16.msra.mxu0 0
  %157 = vmatprep.subr.bf16.mxu0 0
  %158 = vmatpush1.bf16.msra.mxu0 0
  %159 = vmatprep.subr.bf16.mxu0 0
  %160 = vmatpush1.bf16.msra.mxu0 0
  %161 = vmatprep.subr.bf16.mxu0 0
  %162 = vmatpush1.bf16.msra.mxu0 0
  %163 = vmatprep.subr.bf16.mxu0 0
  %164 = vmatpush1.bf16.msra.mxu0 0
  %165 = vmatprep.mubr.bf16.mxu0 0
  %166 = vmatmul.mubr.bf16.gmra.mrb[0].mxu0 %v113
  %v167 = vpop.f32.mrb[0].mxu0
  %v168 = vadd.f32 %v44, %v167
  %v169 = vpop.f32.mrb[0].mxu0
  %v170 = vpop.f32.mrb[0].mxu0
  %v171 = vadd.f32 %v44, %v170
  %v172 = vpop.f32.mrb[0].mxu0
  %173 = vmatprep.mubr.bf16.mxu0 0
  %174 = vmatmul.mubr.bf16.gmra.mrb[0].mxu0 %v116
  %v175 = vpop.f32.mrb[0].mxu0
  %v176 = vadd.f32 %v44, %v175
  %v177 = vpop.f32.mrb[0].mxu0
  %v178 = vpop.f32.mrb[0].mxu0
  %v179 = vadd.f32 %v44, %v178
  %v180 = vpop.f32.mrb[0].mxu0
  %181 = vmatprep.mubr.bf16.mxu0 0
  %182 = vmatmul.mubr.bf16.gmra.mrb[0].mxu0 %v119
  %v183 = vpop.f32.mrb[0].mxu0
  %v184 = vadd.f32 %v44, %v183
  %v185 = vpop.f32.mrb[0].mxu0
  %v186 = vpop.f32.mrb[0].mxu0
  %v187 = vadd.f32 %v44, %v186
  %v188 = vpop.f32.mrb[0].mxu0
  %189 = vmatprep.mubr.bf16.mxu0 0
  %190 = vmatmul.mubr.bf16.gmra.mrb[0].mxu0 %v122
  %v191 = vpop.f32.mrb[0].mxu0
  %v192 = vadd.f32 %v44, %v191
  %v193 = vpop.f32.mrb[0].mxu0
  %v194 = vpop.f32.mrb[0].mxu0
  %v195 = vadd.f32 %v44, %v194
  %v196 = vpop.f32.mrb[0].mxu0
  %197 = vmatprep.mubr.bf16.mxu0 0
  %198 = vmatmul.mubr.bf16.gmra.mrb[0].mxu0 %v125
  %v199 = vpop.f32.mrb[0].mxu0
  %v200 = vadd.f32 %v44, %v199
  %v201 = vpop.f32.mrb[0].mxu0
  %v202 = vpop.f32.mrb[0].mxu0
  %v203 = vadd.f32 %v44, %v202
  %v204 = vpop.f32.mrb[0].mxu0
  %205 = vmatprep.mubr.bf16.mxu0 0
  %206 = vmatmul.mubr.bf16.gmra.mrb[0].mxu0 %v128
  %v207 = vpop.f32.mrb[0].mxu0
  %v208 = vadd.f32 %v44, %v207
  %v209 = vpop.f32.mrb[0].mxu0
  %v210 = vpop.f32.mrb[0].mxu0
  %v211 = vadd.f32 %v44, %v210
  %v212 = vpop.f32.mrb[0].mxu0
  %213 = vmatprep.mubr.bf16.mxu0 0
  %214 = vmatmul.mubr.bf16.gmra.mrb[0].mxu0 %v131
  %v215 = vpop.f32.mrb[0].mxu0
  %v216 = vadd.f32 %v44, %v215
  %v217 = vpop.f32.mrb[0].mxu0
  %v218 = vpop.f32.mrb[0].mxu0
  %v219 = vadd.f32 %v44, %v218
  %v220 = vpop.f32.mrb[0].mxu0
  %221 = vdwg.mxu0
  %222 = vst [vmem:[%s3] sm:$0xff] %v168
  %223 = vst [vmem:[%s3 + $0x8] sm:$0xff] %v171
  %224 = vst [vmem:[%s3 + $0x10] sm:$0xff] %v176
  %225 = vst [vmem:[%s3 + $0x18] sm:$0xff] %v179
  %226 = vst [vmem:[%s3 + $0x20] sm:$0xff] %v184
  %227 = vst [vmem:[%s3 + $0x28] sm:$0xff] %v187
  %228 = vst [vmem:[%s3 + $0x30] sm:$0xff] %v192
  %229 = vst [vmem:[%s3 + $0x38] sm:$0xff] %v195
  %230 = vst [vmem:[%s3 + $0x40] sm:$0xff] %v200
  %231 = vst [vmem:[%s3 + $0x48] sm:$0xff] %v203
  %232 = vst [vmem:[%s3 + $0x50] sm:$0xff] %v208
  %233 = vst [vmem:[%s3 + $0x58] sm:$0xff] %v211
  %234 = vst [vmem:[%s3 + $0x60] sm:$0xff] %v216
  %235 = vst [vmem:[%s3 + $0x68] sm:$0xff] %v219
  // Predicated region
  $region14: #{siamrpn_forward.11} parent=0 // pred_check
    _
  $region15: #{siamrpn_forward.11} parent=0 // pred_check_branch
    %237 = sbr.rel (0) target = $region17
  $region16: #{siamrpn_forward.11} parent=0 // pred_region
    _
  $region17: #{siamrpn_forward.11} parent=0 // pred_fallthru
    _
  // Predicated region
  $region18: #{siamrpn_forward.11} parent=0 // pred_check
    _
  $region19: #{siamrpn_forward.11} parent=0 // pred_check_branch
    %239 = sbr.rel (0) target = $region21
  $region20: #{siamrpn_forward.11} parent=0 // pred_region
    _
  $region21: #{siamrpn_forward.11} parent=0 // pred_fallthru
    _

// kernel: siamrpn_forward.12
$region0: #{siamrpn_forward.12}
  #allocation0 [shape = 'u32[]', space=smem, size = 0x4, offset = 0x4, fixed_abs, tag = 'smem constant byte address 0x4 - core index']
  #allocation1 [shape = 'u32[144,128]{1,0:T(1,128)}', space=vmem, size = 0x12000, scoped, tag = 'internal scratch']
  %s0 = inlined_call_operand.vmem [shape: bf16[4,64,16], index: 0, kind: input, shape index: {}]
  %s1 = inlined_call_operand.vmem [shape: bf16[4,16,128], index: 1, kind: input, shape index: {}]
  %s2 = inlined_call_operand.vmem [shape: f32[4,64,128], index: 2, kind: output, shape index: {}]
  %s3 = sld [smem:[#allocation0]]
  $region41: #{siamrpn_forward.12} parent=0
    _
  %s5 = ssub.s32 1, %s3
  %s6 = scalar_select 0, %s5, %s3
  loop: start=0, step=1, limit=6
  $region2: #{siamrpn_forward.12} parent=0 // loop_pre_header
    _
  $region3: #{siamrpn_forward.12} parent=0 // loop_header
    %s8 = sphi 0, %s12
    %p9 = scmp.ge.s32.totalorder %s8, 6
    %s18 = sphi 0, %s20
    %s21 = sphi 0, %s18
    %s22 = sphi 0, %s21
    %s38 = sphi 0, %s22
    %s44 = sphi 0, %s46
    %s47 = sphi 0, %s44
    %s48 = sphi 0, %s47
    %s64 = sphi 0, %s48
    %s70 = sphi 0, %s72
    %s73 = sphi 0, %s70
    %s74 = sphi 0, %s73
    %s90 = sphi 0, %s74
  $region4: #{siamrpn_forward.12} parent=0 // loop_header_branch
    %11 = sbr.rel (%p9) target = $region8
  $region5: #{siamrpn_forward.12} parent=0 // loop_body
    %s13 = ssub.s32 %s8, 1
    %s14 = ssub.s32 %s8, 2
    %s15 = sadd.s32 %s8, 1
    %s16 = ssub.s32 %s8, %s15
    %p17 = scmp.eq.s32.totalorder %s16, 0
    %s19 = sadd.s32 %s18, 1
    %s20 = scalar_select %p17, %s18, %s19
    %p23 = pneg %p17
    %p24 = scmp.eq.s32.totalorder %s8, 3
    %p25 = por %p23, %p24
    %p26 = scmp.ne.s32.totalorder %s18, %s21
    %p27 = scmp.eq.s32.totalorder %s8, 0
    %p28 = por %p26, %p27
    %p29 = scmp.ne.s32.totalorder %s18, %s21
    %p30 = scmp.eq.s32.totalorder %s13, 3
    %p31 = por %p29, %p30
    %p32 = scmp.ne.s32.totalorder %s21, %s22
    %p33 = scmp.eq.s32.totalorder %s13, 0
    %p34 = por %p32, %p33
    %p35 = scmp.ne.s32.totalorder %s21, %s22
    %p36 = scmp.eq.s32.totalorder %s14, 3
    %p37 = por %p35, %p36
    %p39 = scmp.ne.s32.totalorder %s22, %s38
    %p40 = scmp.eq.s32.totalorder %s14, 0
    %p41 = por %p39, %p40
    %s42 = ssub.s32 %s8, %s15
    %p43 = scmp.eq.s32.totalorder %s42, 0
    %s45 = sadd.s32 %s44, 1
    %s46 = scalar_select %p43, %s44, %s45
    %p49 = pneg %p43
    %p50 = scmp.eq.s32.totalorder %s8, 3
    %p51 = por %p49, %p50
    %p52 = scmp.ne.s32.totalorder %s44, %s47
    %p53 = scmp.eq.s32.totalorder %s8, 0
    %p54 = por %p52, %p53
    %p55 = scmp.ne.s32.totalorder %s44, %s47
    %p56 = scmp.eq.s32.totalorder %s13, 3
    %p57 = por %p55, %p56
    %p58 = scmp.ne.s32.totalorder %s47, %s48
    %p59 = scmp.eq.s32.totalorder %s13, 0
    %p60 = por %p58, %p59
    %p61 = scmp.ne.s32.totalorder %s47, %s48
    %p62 = scmp.eq.s32.totalorder %s14, 3
    %p63 = por %p61, %p62
    %p65 = scmp.ne.s32.totalorder %s48, %s64
    %p66 = scmp.eq.s32.totalorder %s14, 0
    %p67 = por %p65, %p66
    %s68 = ssub.s32 %s8, %s15
    %p69 = scmp.eq.s32.totalorder %s68, 0
    %s71 = sadd.s32 %s70, 1
    %s72 = scalar_select %p69, %s70, %s71
    %p75 = pneg %p69
    %p76 = scmp.eq.s32.totalorder %s8, 3
    %p77 = por %p75, %p76
    %p78 = scmp.ne.s32.totalorder %s70, %s73
    %p79 = scmp.eq.s32.totalorder %s8, 0
    %p80 = por %p78, %p79
    %p81 = scmp.ne.s32.totalorder %s70, %s73
    %p82 = scmp.eq.s32.totalorder %s13, 3
    %p83 = por %p81, %p82
    %p84 = scmp.ne.s32.totalorder %s73, %s74
    %p85 = scmp.eq.s32.totalorder %s13, 0
    %p86 = por %p84, %p85
    %p87 = scmp.ne.s32.totalorder %s73, %s74
    %p88 = scmp.eq.s32.totalorder %s14, 3
    %p89 = por %p87, %p88
    %p91 = scmp.ne.s32.totalorder %s74, %s90
    %p92 = scmp.eq.s32.totalorder %s14, 0
    %p93 = por %p91, %p92
    %p94 = scmp.le.s32.totalorder 1, %s8
    %p95 = scmp.lt.s32.totalorder %s8, 5
    %p96 = pnand %p94, %p95
    %p97 = pneg %p96
    // Predicated region
    $region9: #{siamrpn_forward.12} parent=5 // pred_check
      _
    $region10: #{siamrpn_forward.12} parent=5 // pred_check_branch
      %99 = sbr.rel (%p96) target = $region12
    $region11: #{siamrpn_forward.12} parent=5 // pred_region
      %s100 = ssub.s32 %s8, 1
    $region12: #{siamrpn_forward.12} parent=5 // pred_fallthru
      _
    %p101 = scmp.lt.s32.totalorder %s8, 4
    // Predicated region
    $region13: #{siamrpn_forward.12} parent=5 // pred_check
      %p102 = pneg %p101
    $region14: #{siamrpn_forward.12} parent=5 // pred_check_branch
      %104 = sbr.rel (%p102) target = $region16
    $region15: #{siamrpn_forward.12} parent=5 // pred_region
      // Predicated region
      $region17: #{siamrpn_forward.12} parent=15 // pred_check
        %p105 = pneg %p28
      $region18: #{siamrpn_forward.12} parent=15 // pred_check_branch
        %107 = sbr.rel (%p105) target = $region20
      $region19: #{siamrpn_forward.12} parent=15 // pred_region
        %p108 = scmp.lt.s32.totalorder %s8, 3
        %s109 = scalar_select %p108, %s8, 3
        %s110 = smul.addr %s109, 8
        %s111 = smul.addr %s110, 4
        %s112 = scalar_lea.vmem %s0, %s111
      $region20: #{siamrpn_forward.12} parent=15 // pred_fallthru
        _
      // Predicated region
      $region21: #{siamrpn_forward.12} parent=15 // pred_check
        %p113 = pneg %p54
      $region22: #{siamrpn_forward.12} parent=15 // pred_check_branch
        %115 = sbr.rel (%p113) target = $region24
      $region23: #{siamrpn_forward.12} parent=15 // pred_region
        %p116 = scmp.lt.s32.totalorder %s8, 3
        %s117 = scalar_select %p116, %s8, 3
        %s118 = smul.addr %s117, 2
        %s119 = smul.addr %s118, 4
        %s120 = scalar_lea.vmem %s1, %s119
      $region24: #{siamrpn_forward.12} parent=15 // pred_fallthru
        _
    $region16: #{siamrpn_forward.12} parent=5 // pred_fallthru
      _
    %p121 = scmp.le.s32.totalorder 1, %s8
    %p122 = scmp.lt.s32.totalorder %s8, 5
    %p123 = pnand %p121, %p122
    %p124 = pneg %p123
    // Predicated region
    $region25: #{siamrpn_forward.12} parent=5 // pred_check
      _
    $region26: #{siamrpn_forward.12} parent=5 // pred_check_branch
      %126 = sbr.rel (%p123) target = $region28
    $region27: #{siamrpn_forward.12} parent=5 // pred_region
      %s127 = ssub.s32 %s8, 1
      %p128 = scmp.lt.s32.totalorder %s13, 3
      %s129 = scalar_select %p128, %s13, 3
      %s130 = smul.addr %s129, 8
      %s131 = smul.addr %s130, 4
      %s132 = scalar_lea.vmem %s0, %s131
      %p133 = pneg %p34
      %p134 = pneg %p31
      %p135 = scmp.lt.s32.totalorder %s13, 3
      %s136 = scalar_select %p135, %s13, 3
      %s137 = smul.addr %s136, 2
      %s138 = smul.addr %s137, 4
      %s139 = scalar_lea.vmem %s1, %s138
      %p140 = pneg %p60
      %p141 = pneg %p57
      %p142 = pneg %p86
      %p143 = pneg %p83
      %p144 = scmp.lt.s32.totalorder %s13, 3
      %s145 = scalar_select %p144, %s13, 3
      %s146 = smul.addr %s145, 8
      %s147 = smul.addr %s146, 8
      %s148 = scalar_lea.vmem %s2, %s147
      %p149 = scmp.lt.s32.totalorder %s13, 3
      %s150 = scalar_select %p149, %s13, 3
      %s151 = smul.addr %s150, 8
      %s152 = smul.addr %s151, 4
      %s153 = scalar_lea.vmem %s0, %s152
      %p154 = scmp.lt.s32.totalorder %s13, 3
      %s155 = scalar_select %p154, %s13, 3
      %s156 = smul.addr %s155, 2
      %s157 = smul.addr %s156, 4
      %s158 = scalar_lea.vmem %s1, %s157
      %p159 = scmp.lt.s32.totalorder %s13, 3
      %s160 = scalar_select %p159, %s13, 3
      %s161 = smul.addr %s160, 8
      %s162 = smul.addr %s161, 8
      %s163 = scalar_lea.vmem %s2, %s162
      %v165 = vld [vmem:[%s153] sm:$0xf]
      %v166 = vld [vmem:[%s153 + $0x4] sm:$0xf]
      %v167 = vld [vmem:[%s153 + $0x8] sm:$0xf]
      %v168 = vld [vmem:[%s153 + $0xc] sm:$0xf]
      %v169 = vld [vmem:[%s153 + $0x10] sm:$0xf]
      %v170 = vld [vmem:[%s153 + $0x14] sm:$0xf]
      %v171 = vld [vmem:[%s153 + $0x18] sm:$0xf]
      %v172 = vld [vmem:[%s153 + $0x1c] sm:$0xf]
      %v173 = vld [vmem:[%s158] sm:$0xf]
      %v174 = vld [vmem:[%s158 + $0x4] sm:$0xf]
      %v183 = vunpack.c.l.b16 %v165
      %v184 = vunpack.c.l.b16 %v166
      %v185 = vunpack.c.l.b16 %v167
      %v186 = vunpack.c.l.b16 %v168
      %v187 = vunpack.c.l.b16 %v169
      %v188 = vunpack.c.l.b16 %v170
      %v189 = vunpack.c.l.b16 %v171
      %v190 = vunpack.c.l.b16 %v172
      %v191 = vpack.c.b16 %v184, %v183
      %v192 = vpack.c.b16 %v186, %v185
      %v193 = vpack.c.b16 %v188, %v187
      %v194 = vpack.c.b16 %v190, %v189
      %v197 = vunpack.c.l.b16 %v173
      %v198 = vunpack.c.l.b16 %v174
      %v199 = vpack.c.b16 %v198, %v197
      %vm201 = vcmask 130048
      %v203 = vsel %vm201, %v191, 0
      %v206 = vsel %vm201, %v192, 0
      %v209 = vsel %vm201, %v193, 0
      %v212 = vsel %vm201, %v194, 0
      %214 = vmatprep.subr.bf16.mxu0 0
      %215 = vmatpush1.bf16.msra.mxu0 %v199
      %216 = vmatprep.subr.bf16.mxu0 0
      %217 = vmatpush1.bf16.msra.mxu0 0
      %218 = vmatprep.subr.bf16.mxu0 0
      %219 = vmatpush1.bf16.msra.mxu0 0
      %220 = vmatprep.subr.bf16.mxu0 0
      %221 = vmatpush1.bf16.msra.mxu0 0
      %222 = vmatprep.subr.bf16.mxu0 0
      %223 = vmatpush1.bf16.msra.mxu0 0
      %224 = vmatprep.subr.bf16.mxu0 0
      %225 = vmatpush1.bf16.msra.mxu0 0
      %226 = vmatprep.subr.bf16.mxu0 0
      %227 = vmatpush1.bf16.msra.mxu0 0
      %228 = vmatprep.subr.bf16.mxu0 0
      %229 = vmatpush1.bf16.msra.mxu0 0
      %230 = vmatprep.subr.bf16.mxu0 0
      %231 = vmatpush1.bf16.msra.mxu0 0
      %232 = vmatprep.subr.bf16.mxu0 0
      %233 = vmatpush1.bf16.msra.mxu0 0
      %234 = vmatprep.subr.bf16.mxu0 0
      %235 = vmatpush1.bf16.msra.mxu0 0
      %236 = vmatprep.subr.bf16.mxu0 0
      %237 = vmatpush1.bf16.msra.mxu0 0
      %238 = vmatprep.subr.bf16.mxu0 0
      %239 = vmatpush1.bf16.msra.mxu0 0
      %240 = vmatprep.subr.bf16.mxu0 0
      %241 = vmatpush1.bf16.msra.mxu0 0
      %242 = vmatprep.subr.bf16.mxu0 0
      %243 = vmatpush1.bf16.msra.mxu0 0
      %244 = vmatprep.subr.bf16.mxu0 0
      %245 = vmatpush1.bf16.msra.mxu0 0
      %246 = vmatprep.mubr.bf16.mxu0 0
      %247 = vmatmul.mubr.bf16.gmra.mrb[0].mxu0 %v203
      %v248 = vpop.f32.mrb[0].mxu0
      %v249 = vadd.f32 0.0, %v248
      %v250 = vpop.f32.mrb[0].mxu0
      %v251 = vpop.f32.mrb[0].mxu0
      %v252 = vadd.f32 0.0, %v251
      %v253 = vpop.f32.mrb[0].mxu0
      %254 = vmatprep.mubr.bf16.mxu0 0
      %255 = vmatmul.mubr.bf16.gmra.mrb[0].mxu0 %v206
      %v256 = vpop.f32.mrb[0].mxu0
      %v257 = vadd.f32 0.0, %v256
      %v258 = vpop.f32.mrb[0].mxu0
      %v259 = vpop.f32.mrb[0].mxu0
      %v260 = vadd.f32 0.0, %v259
      %v261 = vpop.f32.mrb[0].mxu0
      %262 = vmatprep.mubr.bf16.mxu0 0
      %263 = vmatmul.mubr.bf16.gmra.mrb[0].mxu0 %v209
      %v264 = vpop.f32.mrb[0].mxu0
      %v265 = vadd.f32 0.0, %v264
      %v266 = vpop.f32.mrb[0].mxu0
      %v267 = vpop.f32.mrb[0].mxu0
      %v268 = vadd.f32 0.0, %v267
      %v269 = vpop.f32.mrb[0].mxu0
      %270 = vmatprep.mubr.bf16.mxu0 0
      %271 = vmatmul.mubr.bf16.gmra.mrb[0].mxu0 %v212
      %v272 = vpop.f32.mrb[0].mxu0
      %v273 = vadd.f32 0.0, %v272
      %v274 = vpop.f32.mrb[0].mxu0
      %v275 = vpop.f32.mrb[0].mxu0
      %v276 = vadd.f32 0.0, %v275
      %v277 = vpop.f32.mrb[0].mxu0
      %278 = vdwg.mxu0
      %279 = vst [vmem:[%s163] sm:$0xff] %v249
      %280 = vst [vmem:[%s163 + $0x8] sm:$0xff] %v252
      %281 = vst [vmem:[%s163 + $0x10] sm:$0xff] %v257
      %282 = vst [vmem:[%s163 + $0x18] sm:$0xff] %v260
      %283 = vst [vmem:[%s163 + $0x20] sm:$0xff] %v265
      %284 = vst [vmem:[%s163 + $0x28] sm:$0xff] %v268
      %285 = vst [vmem:[%s163 + $0x30] sm:$0xff] %v273
      %286 = vst [vmem:[%s163 + $0x38] sm:$0xff] %v276
      %p287 = scmp.lt.s32.totalorder %s13, 3
      %s288 = scalar_select %p287, %s13, 3
      %s289 = smul.addr %s288, 8
      %s290 = smul.addr %s289, 8
      %s291 = scalar_lea.vmem %s2, %s290
      // Predicated region
      $region29: #{siamrpn_forward.12} parent=27 // pred_check
        %p292 = pneg %p83
      $region30: #{siamrpn_forward.12} parent=27 // pred_check_branch
        %294 = sbr.rel (%p292) target = $region32
      $region31: #{siamrpn_forward.12} parent=27 // pred_region
        _
      $region32: #{siamrpn_forward.12} parent=27 // pred_fallthru
        _
    $region28: #{siamrpn_forward.12} parent=5 // pred_fallthru
      _
    %p295 = scmp.le.s32.totalorder 2, %s8
    // Predicated region
    $region33: #{siamrpn_forward.12} parent=5 // pred_check
      %p296 = pneg %p295
    $region34: #{siamrpn_forward.12} parent=5 // pred_check_branch
      %298 = sbr.rel (%p296) target = $region36
    $region35: #{siamrpn_forward.12} parent=5 // pred_region
      %s299 = ssub.s32 %s8, 2
      // Predicated region
      $region37: #{siamrpn_forward.12} parent=35 // pred_check
        %p300 = pneg %p89
      $region38: #{siamrpn_forward.12} parent=35 // pred_check_branch
        %302 = sbr.rel (%p300) target = $region40
      $region39: #{siamrpn_forward.12} parent=35 // pred_region
        %p303 = scmp.lt.s32.totalorder %s14, 3
        %s304 = scalar_select %p303, %s14, 3
        %s305 = smul.addr %s304, 8
        %s306 = smul.addr %s305, 8
        %s307 = scalar_lea.vmem %s2, %s306
      $region40: #{siamrpn_forward.12} parent=35 // pred_fallthru
        _
    $region36: #{siamrpn_forward.12} parent=5 // pred_fallthru
      _
  $region6: #{siamrpn_forward.12} parent=0 // loop_footer
    %s12 = sadd.s32 1, %s8
  $region7: #{siamrpn_forward.12} parent=0 // loop_footer_branch
    %7 = sbr.rel target = $region3
  $region8: #{siamrpn_forward.12} parent=0 // loop_exit
    _

// kernel: siamrpn_forward.13
$region0: #{siamrpn_forward.13}
  #allocation0 [shape = 'u32[]', space=smem, size = 0x4, offset = 0x4, fixed_abs, tag = 'smem constant byte address 0x4 - core index']
  #allocation1 [shape = 'u32[144,128]{1,0:T(1,128)}', space=vmem, size = 0x12000, scoped, tag = 'internal scratch']
  %s0 = inlined_call_operand.vmem [shape: bf16[112,32], index: 0, kind: input, shape index: {}]
  %s1 = inlined_call_operand.vmem [shape: bf16[32,128], index: 1, kind: input, shape index: {}]
  %s2 = inlined_call_operand.vmem [shape: f32[1,128], index: 2, kind: input, shape index: {}]
  %s3 = inlined_call_operand.vmem [shape: f32[112,128], index: 3, kind: output, shape index: {}]
  %s4 = sld [smem:[#allocation0]]
  $region22: #{siamrpn_forward.13} parent=0
    _
  %s6 = ssub.s32 1, %s4
  %s7 = scalar_select 0, %s6, %s4
  // Predicated region
  $region2: #{siamrpn_forward.13} parent=0 // pred_check
    _
  $region3: #{siamrpn_forward.13} parent=0 // pred_check_branch
    %9 = sbr.rel (0) target = $region5
  $region4: #{siamrpn_forward.13} parent=0 // pred_region
    _
  $region5: #{siamrpn_forward.13} parent=0 // pred_fallthru
    _
  // Predicated region
  $region6: #{siamrpn_forward.13} parent=0 // pred_check
    _
  $region7: #{siamrpn_forward.13} parent=0 // pred_check_branch
    %11 = sbr.rel (0) target = $region9
  $region8: #{siamrpn_forward.13} parent=0 // pred_region
    _
  $region9: #{siamrpn_forward.13} parent=0 // pred_fallthru
    _
  // Predicated region
  $region10: #{siamrpn_forward.13} parent=0 // pred_check
    _
  $region11: #{siamrpn_forward.13} parent=0 // pred_check_branch
    %13 = sbr.rel (0) target = $region13
  $region12: #{siamrpn_forward.13} parent=0 // pred_region
    _
  $region13: #{siamrpn_forward.13} parent=0 // pred_fallthru
    _
  %v15 = vld [vmem:[%s0] sm:$0xf]
  %v16 = vld [vmem:[%s0 + $0x4] sm:$0xf]
  %v17 = vld [vmem:[%s0 + $0x8] sm:$0xf]
  %v18 = vld [vmem:[%s0 + $0xc] sm:$0xf]
  %v19 = vld [vmem:[%s0 + $0x10] sm:$0xf]
  %v20 = vld [vmem:[%s0 + $0x14] sm:$0xf]
  %v21 = vld [vmem:[%s0 + $0x18] sm:$0xf]
  %v22 = vld [vmem:[%s0 + $0x1c] sm:$0xf]
  %v23 = vld [vmem:[%s0 + $0x20] sm:$0xf]
  %v24 = vld [vmem:[%s0 + $0x24] sm:$0xf]
  %v25 = vld [vmem:[%s0 + $0x28] sm:$0xf]
  %v26 = vld [vmem:[%s0 + $0x2c] sm:$0xf]
  %v27 = vld [vmem:[%s0 + $0x30] sm:$0xf]
  %v28 = vld [vmem:[%s0 + $0x34] sm:$0xf]
  %v29 = vld [vmem:[%s1] sm:$0xf]
  %v30 = vld [vmem:[%s1 + $0x4] sm:$0xf]
  %v31 = vld [vmem:[%s1 + $0x8] sm:$0xf]
  %v32 = vld [vmem:[%s1 + $0xc] sm:$0xf]
  %v33 = vld [vmem:[%s2] sm:$0x1]
  %v35 = vlaneseq
  %v36 = vshrl.u32 %v35, 7
  %v37 = vsub.s32 0, %v36
  %v38 = vrot.slane %v33, %v37
  %v54 = vunpack.c.l.b16 %v15
  %v55 = vunpack.c.l.b16 %v16
  %v56 = vunpack.c.l.b16 %v17
  %v57 = vunpack.c.l.b16 %v18
  %v58 = vunpack.c.l.b16 %v19
  %v59 = vunpack.c.l.b16 %v20
  %v60 = vunpack.c.l.b16 %v21
  %v61 = vunpack.c.l.b16 %v22
  %v62 = vunpack.c.l.b16 %v23
  %v63 = vunpack.c.l.b16 %v24
  %v64 = vunpack.c.l.b16 %v25
  %v65 = vunpack.c.l.b16 %v26
  %v66 = vunpack.c.l.b16 %v27
  %v67 = vunpack.c.l.b16 %v28
  %v68 = vpack.c.b16 %v55, %v54
  %v69 = vpack.c.b16 %v57, %v56
  %v70 = vpack.c.b16 %v59, %v58
  %v71 = vpack.c.b16 %v61, %v60
  %v72 = vpack.c.b16 %v63, %v62
  %v73 = vpack.c.b16 %v65, %v64
  %v74 = vpack.c.b16 %v67, %v66
  %v79 = vunpack.c.l.b16 %v29
  %v80 = vunpack.c.l.b16 %v30
  %v81 = vunpack.c.l.b16 %v31
  %v82 = vunpack.c.l.b16 %v32
  %v83 = vpack.c.b16 %v80, %v79
  %v84 = vpack.c.b16 %v82, %v81
  %vm87 = vcmask 261120
  %v89 = vsel %vm87, %v68, 0
  %v92 = vsel %vm87, %v69, 0
  %v95 = vsel %vm87, %v70, 0
  %v98 = vsel %vm87, %v71, 0
  %v101 = vsel %vm87, %v72, 0
  %v104 = vsel %vm87, %v73, 0
  %v107 = vsel %vm87, %v74, 0
  %109 = vmatprep.subr.bf16.mxu0 0
  %110 = vmatpush1.bf16.msra.mxu0 %v83
  %111 = vmatprep.subr.bf16.mxu0 0
  %112 = vmatpush1.bf16.msra.mxu0 %v84
  %113 = vmatprep.subr.bf16.mxu0 0
  %114 = vmatpush1.bf16.msra.mxu0 0
  %115 = vmatprep.subr.bf16.mxu0 0
  %116 = vmatpush1.bf16.msra.mxu0 0
  %117 = vmatprep.subr.bf16.mxu0 0
  %118 = vmatpush1.bf16.msra.mxu0 0
  %119 = vmatprep.subr.bf16.mxu0 0
  %120 = vmatpush1.bf16.msra.mxu0 0
  %121 = vmatprep.subr.bf16.mxu0 0
  %122 = vmatpush1.bf16.msra.mxu0 0
  %123 = vmatprep.subr.bf16.mxu0 0
  %124 = vmatpush1.bf16.msra.mxu0 0
  %125 = vmatprep.subr.bf16.mxu0 0
  %126 = vmatpush1.bf16.msra.mxu0 0
  %127 = vmatprep.subr.bf16.mxu0 0
  %128 = vmatpush1.bf16.msra.mxu0 0
  %129 = vmatprep.subr.bf16.mxu0 0
  %130 = vmatpush1.bf16.msra.mxu0 0
  %131 = vmatprep.subr.bf16.mxu0 0
  %132 = vmatpush1.bf16.msra.mxu0 0
  %133 = vmatprep.subr.bf16.mxu0 0
  %134 = vmatpush1.bf16.msra.mxu0 0
  %135 = vmatprep.subr.bf16.mxu0 0
  %136 = vmatpush1.bf16.msra.mxu0 0
  %137 = vmatprep.subr.bf16.mxu0 0
  %138 = vmatpush1.bf16.msra.mxu0 0
  %139 = vmatprep.subr.bf16.mxu0 0
  %140 = vmatpush1.bf16.msra.mxu0 0
  %141 = vmatprep.mubr.bf16.mxu0 0
  %142 = vmatmul.mubr.bf16.gmra.mrb[0].mxu0 %v89
  %v143 = vpop.f32.mrb[0].mxu0
  %v144 = vadd.f32 %v38, %v143
  %v145 = vpop.f32.mrb[0].mxu0
  %v146 = vpop.f32.mrb[0].mxu0
  %v147 = vadd.f32 %v38, %v146
  %v148 = vpop.f32.mrb[0].mxu0
  %149 = vmatprep.mubr.bf16.mxu0 0
  %150 = vmatmul.mubr.bf16.gmra.mrb[0].mxu0 %v92
  %v151 = vpop.f32.mrb[0].mxu0
  %v152 = vadd.f32 %v38, %v151
  %v153 = vpop.f32.mrb[0].mxu0
  %v154 = vpop.f32.mrb[0].mxu0
  %v155 = vadd.f32 %v38, %v154
  %v156 = vpop.f32.mrb[0].mxu0
  %157 = vmatprep.mubr.bf16.mxu0 0
  %158 = vmatmul.mubr.bf16.gmra.mrb[0].mxu0 %v95
  %v159 = vpop.f32.mrb[0].mxu0
  %v160 = vadd.f32 %v38, %v159
  %v161 = vpop.f32.mrb[0].mxu0
  %v162 = vpop.f32.mrb[0].mxu0
  %v163 = vadd.f32 %v38, %v162
  %v164 = vpop.f32.mrb[0].mxu0
  %165 = vmatprep.mubr.bf16.mxu0 0
  %166 = vmatmul.mubr.bf16.gmra.mrb[0].mxu0 %v98
  %v167 = vpop.f32.mrb[0].mxu0
  %v168 = vadd.f32 %v38, %v167
  %v169 = vpop.f32.mrb[0].mxu0
  %v170 = vpop.f32.mrb[0].mxu0
  %v171 = vadd.f32 %v38, %v170
  %v172 = vpop.f32.mrb[0].mxu0
  %173 = vmatprep.mubr.bf16.mxu0 0
  %174 = vmatmul.mubr.bf16.gmra.mrb[0].mxu0 %v101
  %v175 = vpop.f32.mrb[0].mxu0
  %v176 = vadd.f32 %v38, %v175
  %v177 = vpop.f32.mrb[0].mxu0
  %v178 = vpop.f32.mrb[0].mxu0
  %v179 = vadd.f32 %v38, %v178
  %v180 = vpop.f32.mrb[0].mxu0
  %181 = vmatprep.mubr.bf16.mxu0 0
  %182 = vmatmul.mubr.bf16.gmra.mrb[0].mxu0 %v104
  %v183 = vpop.f32.mrb[0].mxu0
  %v184 = vadd.f32 %v38, %v183
  %v185 = vpop.f32.mrb[0].mxu0
  %v186 = vpop.f32.mrb[0].mxu0
  %v187 = vadd.f32 %v38, %v186
  %v188 = vpop.f32.mrb[0].mxu0
  %189 = vmatprep.mubr.bf16.mxu0 0
  %190 = vmatmul.mubr.bf16.gmra.mrb[0].mxu0 %v107
  %v191 = vpop.f32.mrb[0].mxu0
  %v192 = vadd.f32 %v38, %v191
  %v193 = vpop.f32.mrb[0].mxu0
  %v194 = vpop.f32.mrb[0].mxu0
  %v195 = vadd.f32 %v38, %v194
  %v196 = vpop.f32.mrb[0].mxu0
  %197 = vdwg.mxu0
  %198 = vst [vmem:[%s3] sm:$0xff] %v144
  %199 = vst [vmem:[%s3 + $0x8] sm:$0xff] %v147
  %200 = vst [vmem:[%s3 + $0x10] sm:$0xff] %v152
  %201 = vst [vmem:[%s3 + $0x18] sm:$0xff] %v155
  %202 = vst [vmem:[%s3 + $0x20] sm:$0xff] %v160
  %203 = vst [vmem:[%s3 + $0x28] sm:$0xff] %v163
  %204 = vst [vmem:[%s3 + $0x30] sm:$0xff] %v168
  %205 = vst [vmem:[%s3 + $0x38] sm:$0xff] %v171
  %206 = vst [vmem:[%s3 + $0x40] sm:$0xff] %v176
  %207 = vst [vmem:[%s3 + $0x48] sm:$0xff] %v179
  %208 = vst [vmem:[%s3 + $0x50] sm:$0xff] %v184
  %209 = vst [vmem:[%s3 + $0x58] sm:$0xff] %v187
  %210 = vst [vmem:[%s3 + $0x60] sm:$0xff] %v192
  %211 = vst [vmem:[%s3 + $0x68] sm:$0xff] %v195
  // Predicated region
  $region14: #{siamrpn_forward.13} parent=0 // pred_check
    _
  $region15: #{siamrpn_forward.13} parent=0 // pred_check_branch
    %213 = sbr.rel (0) target = $region17
  $region16: #{siamrpn_forward.13} parent=0 // pred_region
    _
  $region17: #{siamrpn_forward.13} parent=0 // pred_fallthru
    _
  // Predicated region
  $region18: #{siamrpn_forward.13} parent=0 // pred_check
    _
  $region19: #{siamrpn_forward.13} parent=0 // pred_check_branch
    %215 = sbr.rel (0) target = $region21
  $region20: #{siamrpn_forward.13} parent=0 // pred_region
    _
  $region21: #{siamrpn_forward.13} parent=0 // pred_fallthru
    _

</llo_original>
